<compile_context>
chip_gen: v6e
topology: v6e:2x2x1
jax: 0.10.0
libtpu: 0.0.40
codegen_flags: <defaults>
</compile_context>

<pallas_src>
import jax
import jax.numpy as jnp
from jax.experimental import pallas as pl
from jax.experimental.pallas import tpu as pltpu  # noqa: F401  (TPU backend)

# ---------------- problem configuration (consistent with the module) ---------
N = 2          # batch
CIN = 4        # in_channels
COUT = 8       # out_channels
D = H = W = 8  # spatial
K = 3          # kernel_size
STRIDE = 1
PAD = 0        # padding=0 -> VALID
EPS = 1e-5     # BatchNorm3d default eps

DOUT = (D + 2 * PAD - K) // STRIDE + 1
OH = (H + 2 * PAD - K) // STRIDE + 1
OW = (W + 2 * PAD - K) // STRIDE + 1

HWC = H * W * CIN        # 256  lane-dense input width
OHWC = OH * OW * COUT    # 288  lane-dense output width
COUNT = float(N * DOUT * OH * OW)   # elements per channel for BN batch stats


# --------------------------- fused kernel ------------------------------------
def conv_bn_relu_kernel(x_ref, wb_ref, m_ref, mt_ref, gamma_ref, beta_ref, o_ref):
    # x_ref     : (N, D, HWC)        f32   lane-dense input
    # wb_ref    : (K, HWC, OHWC)     f32   banded conv weight slabs (one per kd)
    # m_ref     : (OHWC, COUT)       f32   m[l, c]  = 1 if l % COUT == c
    # mt_ref    : (COUT, OHWC)       f32   transpose of m (channel broadcast)
    # gamma_ref : (1, COUT)          f32
    # beta_ref  : (1, COUT)          f32
    # o_ref     : (N*DOUT, OHWC)     f32   lane-dense output slab

    # ---- convolution: K MXU matmuls per batch element (stride=1, VALID) ----
    convs = []
    for n in range(N):
        acc = jnp.dot(x_ref[n, pl.ds(0, DOUT), :], wb_ref[0],
                      preferred_element_type=jnp.float32)
        for kd in range(1, K):
            acc = acc + jnp.dot(x_ref[n, pl.ds(kd, DOUT), :], wb_ref[kd],
                                preferred_element_type=jnp.float32)
        convs.append(acc)                                # (DOUT, OHWC)

    m = m_ref[...]                                       # (OHWC, COUT)
    mt = mt_ref[...]                                     # (COUT, OHWC)
    inv_count = 1.0 / COUNT

    # ---- BatchNorm batch statistics (training mode, biased variance) ----
    rowsum = jnp.sum(convs[0], axis=0, keepdims=True)    # (1, OHWC)
    for acc in convs[1:]:
        rowsum = rowsum + jnp.sum(acc, axis=0, keepdims=True)
    mean = jnp.dot(rowsum, m,
                   preferred_element_type=jnp.float32) * inv_count      # (1, COUT)
    mean_row = jnp.dot(mean, mt, preferred_element_type=jnp.float32)    # (1, OHWC)

    # two-pass variance: avoids E[x^2] - mean^2 cancellation
    rowssq = jnp.zeros((1, OHWC), jnp.float32)
    for acc in convs:
        d = acc - mean_row
        rowssq = rowssq + jnp.sum(d * d, axis=0, keepdims=True)
    var = jnp.dot(rowssq, m,
                  preferred_element_type=jnp.float32) * inv_count       # (1, COUT)

    scale = gamma_ref[...] / jnp.sqrt(var + EPS)                        # (1, COUT)
    bias = beta_ref[...] - mean * scale                                 # (1, COUT)
    scale_row = jnp.dot(scale, mt, preferred_element_type=jnp.float32)  # (1, OHWC)
    bias_row = jnp.dot(bias, mt, preferred_element_type=jnp.float32)    # (1, OHWC)

    # ---- fused BN affine + ReLU, single lane-dense store per batch ----
    for n, acc in enumerate(convs):
        o_ref[pl.ds(n * DOUT, DOUT), :] = jnp.maximum(
            acc * scale_row + bias_row, 0.0)


# ------------------------------- wrapper -------------------------------------
def _pack_banded_weights(w_oidhw):
    """Repack Conv3d weights (COUT, CIN, KD, KH, KW) into banded GEMM slabs.

    Returns wb of shape (K, HWC, OHWC) such that, for stride=1 / VALID padding:
        conv[n, od, oh, ow, co] = sum_kd  x[n, od+kd].ravel() @ wb[kd]
    Pure weight layout work (no activation data, no FLOPs against activations).
    """
    w5 = jnp.transpose(w_oidhw, (2, 3, 4, 1, 0))   # (KD, KH, KW, CIN, COUT)
    sh = jnp.stack([jnp.eye(H, OH, k=-kh, dtype=jnp.float32) for kh in range(K)])
    sw = jnp.stack([jnp.eye(W, OW, k=-kw, dtype=jnp.float32) for kw in range(K)])
    # (KD, H, W, CIN, OH, OW, COUT): nonzero only where h-oh, w-ow in [0, K)
    wb = jnp.einsum("aho,bwp,dabij->dhwiopj", sh, sw, w5)
    return wb.reshape(K, HWC, OHWC)


def _channel_selectors():
    """0/1 matrices mapping lane index l of the (·, OHWC) slab to channel l%COUT."""
    lane_ch = jnp.arange(OHWC) % COUT
    m = (lane_ch[:, None] == jnp.arange(COUT)[None, :]).astype(jnp.float32)
    return m, m.T                                   # (OHWC, COUT), (COUT, OHWC)


@jax.jit
def conv3d_block_forward(x_ncdhw, w_oidhw, gamma, beta):
    """Forward pass of Conv3DBlock (training-mode BatchNorm, PyTorch default)."""
    # layout plumbing only: NCDHW -> lane-dense (N, D, H*W*CIN)
    x2 = jnp.transpose(x_ncdhw, (0, 2, 3, 4, 1)).reshape(N, D, HWC)
    wb = _pack_banded_weights(w_oidhw)
    m, mt = _channel_selectors()
    gamma2 = gamma.reshape(1, COUT).astype(jnp.float32)
    beta2 = beta.reshape(1, COUT).astype(jnp.float32)

    out2d = pl.pallas_call(
        conv_bn_relu_kernel,
        out_shape=jax.ShapeDtypeStruct((N * DOUT, OHWC), jnp.float32),
    )(x2, wb, m, mt, gamma2, beta2)

    # lane-dense slab -> NDHWC -> NCDHW
    out = out2d.reshape(N, DOUT, OH, OW, COUT)
    return jnp.transpose(out, (0, 4, 1, 2, 3))


# ------------------------------- reference -----------------------------------
def reference_forward(x_ncdhw, w_oidhw, gamma, beta):
    conv = jax.lax.conv_general_dilated(
        x_ncdhw, w_oidhw,
        window_strides=(STRIDE, STRIDE, STRIDE),
        padding="VALID",
        dimension_numbers=("NCDHW", "OIDHW", "NCDHW"),
    )
    mean = conv.mean(axis=(0, 2, 3, 4), keepdims=True)
    var = conv.var(axis=(0, 2, 3, 4), keepdims=True)   # biased, like PyTorch train mode
    g = gamma.reshape(1, -1, 1, 1, 1)
    b = beta.reshape(1, -1, 1, 1, 1)
    return jnp.maximum((conv - mean) / jnp.sqrt(var + EPS) * g + b, 0.0)


if __name__ == "__main__":
    key = jax.random.PRNGKey(0)
    kx, kw, kg, kb = jax.random.split(key, 4)

    x = jax.random.normal(kx, (N, CIN, D, H, W), dtype=jnp.float32)
    # Conv3d weight (out_channels, in_channels, kD, kH, kW), bias=False
    w = 0.1 * jax.random.normal(kw, (COUT, CIN, K, K, K), dtype=jnp.float32)
    # BatchNorm3d affine params
    gamma = 1.0 + 0.1 * jax.random.normal(kg, (COUT,), dtype=jnp.float32)
    beta = 0.1 * jax.random.normal(kb, (COUT,), dtype=jnp.float32)

    out = conv3d_block_forward(x, w, gamma, beta)
    out = jax.block_until_ready(out)

    ref = reference_forward(x, w, gamma, beta)
    assert out.shape == ref.shape == (N, COUT, DOUT, OH, OW)
    max_err = jnp.max(jnp.abs(out - ref))
    assert jnp.allclose(out, ref, atol=1e-4, rtol=1e-4), f"max abs diff = {max_err}"

    # TODO(synk): BatchNorm3d running_mean/running_var buffer updates (stateful
    # training side effect) are not part of the returned tensor and are omitted.
    print("KERNEL_OK")
</pallas_src>

<mosaic_0001>
module attributes {stable_mosaic.version = 11 : i64} {
  func.func @conv_bn_relu_kernel(%arg0: memref<2x8x256xf32, #tpu.memory_space<vmem>>, %arg1: memref<3x256x288xf32, #tpu.memory_space<vmem>>, %arg2: memref<288x8xf32, #tpu.memory_space<vmem>>, %arg3: memref<8x288xf32, #tpu.memory_space<vmem>>, %arg4: memref<1x8xf32, #tpu.memory_space<vmem>>, %arg5: memref<1x8xf32, #tpu.memory_space<vmem>>, %arg6: memref<12x288xf32, #tpu.memory_space<vmem>>) attributes {dimension_semantics = [], scalar_prefetch = 0 : i64, scratch_operands = 0 : i64, tpu.core_type = #tpu.core_type<tc>} {
    %c0 = arith.constant 0 : index
    %c0_0 = arith.constant 0 : index
    %c0_1 = arith.constant 0 : index
    %0 = vector.load %arg0[%c0, %c0_0, %c0_1] : memref<2x8x256xf32, #tpu.memory_space<vmem>>, vector<1x6x256xf32>
    %1 = vector.shape_cast %0 : vector<1x6x256xf32> to vector<6x256xf32>
    %c0_2 = arith.constant 0 : index
    %c0_3 = arith.constant 0 : index
    %c0_4 = arith.constant 0 : index
    %2 = vector.load %arg1[%c0_2, %c0_3, %c0_4] : memref<3x256x288xf32, #tpu.memory_space<vmem>>, vector<1x256x288xf32>
    %3 = vector.shape_cast %2 : vector<1x256x288xf32> to vector<256x288xf32>
    %cst = arith.constant dense<0.000000e+00> : vector<6x288xf32>
    %4 = tpu.matmul %1, %3, %cst {dimension_numbers = #tpu.dot_dimension_numbers<[1], [0], [0], [1], [0, 0, 1, 1], [], []>} : vector<6x256xf32>, vector<256x288xf32>, vector<6x288xf32> -> vector<6x288xf32>
    %c0_5 = arith.constant 0 : index
    %c1 = arith.constant 1 : index
    %c0_6 = arith.constant 0 : index
    %5 = vector.load %arg0[%c0_5, %c1, %c0_6] : memref<2x8x256xf32, #tpu.memory_space<vmem>>, vector<1x6x256xf32>
    %6 = vector.shape_cast %5 : vector<1x6x256xf32> to vector<6x256xf32>
    %c1_7 = arith.constant 1 : index
    %c0_8 = arith.constant 0 : index
    %c0_9 = arith.constant 0 : index
    %7 = vector.load %arg1[%c1_7, %c0_8, %c0_9] : memref<3x256x288xf32, #tpu.memory_space<vmem>>, vector<1x256x288xf32>
    %8 = vector.shape_cast %7 : vector<1x256x288xf32> to vector<256x288xf32>
    %cst_10 = arith.constant dense<0.000000e+00> : vector<6x288xf32>
    %9 = tpu.matmul %6, %8, %cst_10 {dimension_numbers = #tpu.dot_dimension_numbers<[1], [0], [0], [1], [0, 0, 1, 1], [], []>} : vector<6x256xf32>, vector<256x288xf32>, vector<6x288xf32> -> vector<6x288xf32>
    %10 = arith.addf %4, %9 : vector<6x288xf32>
    %c0_11 = arith.constant 0 : index
    %c2 = arith.constant 2 : index
    %c0_12 = arith.constant 0 : index
    %11 = vector.load %arg0[%c0_11, %c2, %c0_12] : memref<2x8x256xf32, #tpu.memory_space<vmem>>, vector<1x6x256xf32>
    %12 = vector.shape_cast %11 : vector<1x6x256xf32> to vector<6x256xf32>
    %c2_13 = arith.constant 2 : index
    %c0_14 = arith.constant 0 : index
    %c0_15 = arith.constant 0 : index
    %13 = vector.load %arg1[%c2_13, %c0_14, %c0_15] : memref<3x256x288xf32, #tpu.memory_space<vmem>>, vector<1x256x288xf32>
    %14 = vector.shape_cast %13 : vector<1x256x288xf32> to vector<256x288xf32>
    %cst_16 = arith.constant dense<0.000000e+00> : vector<6x288xf32>
    %15 = tpu.matmul %12, %14, %cst_16 {dimension_numbers = #tpu.dot_dimension_numbers<[1], [0], [0], [1], [0, 0, 1, 1], [], []>} : vector<6x256xf32>, vector<256x288xf32>, vector<6x288xf32> -> vector<6x288xf32>
    %16 = arith.addf %10, %15 : vector<6x288xf32>
    %c1_17 = arith.constant 1 : index
    %c0_18 = arith.constant 0 : index
    %c0_19 = arith.constant 0 : index
    %17 = vector.load %arg0[%c1_17, %c0_18, %c0_19] : memref<2x8x256xf32, #tpu.memory_space<vmem>>, vector<1x6x256xf32>
    %18 = vector.shape_cast %17 : vector<1x6x256xf32> to vector<6x256xf32>
    %c0_20 = arith.constant 0 : index
    %c0_21 = arith.constant 0 : index
    %c0_22 = arith.constant 0 : index
    %19 = vector.load %arg1[%c0_20, %c0_21, %c0_22] : memref<3x256x288xf32, #tpu.memory_space<vmem>>, vector<1x256x288xf32>
    %20 = vector.shape_cast %19 : vector<1x256x288xf32> to vector<256x288xf32>
    %cst_23 = arith.constant dense<0.000000e+00> : vector<6x288xf32>
    %21 = tpu.matmul %18, %20, %cst_23 {dimension_numbers = #tpu.dot_dimension_numbers<[1], [0], [0], [1], [0, 0, 1, 1], [], []>} : vector<6x256xf32>, vector<256x288xf32>, vector<6x288xf32> -> vector<6x288xf32>
    %c1_24 = arith.constant 1 : index
    %c1_25 = arith.constant 1 : index
    %c0_26 = arith.constant 0 : index
    %22 = vector.load %arg0[%c1_24, %c1_25, %c0_26] : memref<2x8x256xf32, #tpu.memory_space<vmem>>, vector<1x6x256xf32>
    %23 = vector.shape_cast %22 : vector<1x6x256xf32> to vector<6x256xf32>
    %c1_27 = arith.constant 1 : index
    %c0_28 = arith.constant 0 : index
    %c0_29 = arith.constant 0 : index
    %24 = vector.load %arg1[%c1_27, %c0_28, %c0_29] : memref<3x256x288xf32, #tpu.memory_space<vmem>>, vector<1x256x288xf32>
    %25 = vector.shape_cast %24 : vector<1x256x288xf32> to vector<256x288xf32>
    %cst_30 = arith.constant dense<0.000000e+00> : vector<6x288xf32>
    %26 = tpu.matmul %23, %25, %cst_30 {dimension_numbers = #tpu.dot_dimension_numbers<[1], [0], [0], [1], [0, 0, 1, 1], [], []>} : vector<6x256xf32>, vector<256x288xf32>, vector<6x288xf32> -> vector<6x288xf32>
    %27 = arith.addf %21, %26 : vector<6x288xf32>
    %c1_31 = arith.constant 1 : index
    %c2_32 = arith.constant 2 : index
    %c0_33 = arith.constant 0 : index
    %28 = vector.load %arg0[%c1_31, %c2_32, %c0_33] : memref<2x8x256xf32, #tpu.memory_space<vmem>>, vector<1x6x256xf32>
    %29 = vector.shape_cast %28 : vector<1x6x256xf32> to vector<6x256xf32>
    %c2_34 = arith.constant 2 : index
    %c0_35 = arith.constant 0 : index
    %c0_36 = arith.constant 0 : index
    %30 = vector.load %arg1[%c2_34, %c0_35, %c0_36] : memref<3x256x288xf32, #tpu.memory_space<vmem>>, vector<1x256x288xf32>
    %31 = vector.shape_cast %30 : vector<1x256x288xf32> to vector<256x288xf32>
    %cst_37 = arith.constant dense<0.000000e+00> : vector<6x288xf32>
    %32 = tpu.matmul %29, %31, %cst_37 {dimension_numbers = #tpu.dot_dimension_numbers<[1], [0], [0], [1], [0, 0, 1, 1], [], []>} : vector<6x256xf32>, vector<256x288xf32>, vector<6x288xf32> -> vector<6x288xf32>
    %33 = arith.addf %27, %32 : vector<6x288xf32>
    %c0_38 = arith.constant 0 : index
    %c0_39 = arith.constant 0 : index
    %34 = vector.load %arg2[%c0_38, %c0_39] : memref<288x8xf32, #tpu.memory_space<vmem>>, vector<288x8xf32>
    %c0_40 = arith.constant 0 : index
    %c0_41 = arith.constant 0 : index
    %35 = vector.load %arg3[%c0_40, %c0_41] : memref<8x288xf32, #tpu.memory_space<vmem>>, vector<8x288xf32>
    %cst_42 = arith.constant dense<0.000000e+00> : vector<288xf32>
    %36 = vector.multi_reduction <add>, %16, %cst_42 [0] : vector<6x288xf32> to vector<288xf32>
    %37 = vector.shape_cast %36 : vector<288xf32> to vector<1x288xf32>
    %cst_43 = arith.constant dense<0.000000e+00> : vector<288xf32>
    %38 = vector.multi_reduction <add>, %33, %cst_43 [0] : vector<6x288xf32> to vector<288xf32>
    %39 = vector.shape_cast %38 : vector<288xf32> to vector<1x288xf32>
    %40 = arith.addf %37, %39 : vector<1x288xf32>
    %cst_44 = arith.constant dense<0.000000e+00> : vector<1x8xf32>
    %41 = tpu.matmul %40, %34, %cst_44 {dimension_numbers = #tpu.dot_dimension_numbers<[1], [0], [0], [1], [0, 0, 1, 1], [], []>} : vector<1x288xf32>, vector<288x8xf32>, vector<1x8xf32> -> vector<1x8xf32>
    %cst_45 = arith.constant 0.00231481483 : f32
    %42 = vector.broadcast %cst_45 : f32 to vector<1x8xf32>
    %43 = arith.mulf %41, %42 : vector<1x8xf32>
    %cst_46 = arith.constant dense<0.000000e+00> : vector<1x288xf32>
    %44 = tpu.matmul %43, %35, %cst_46 {dimension_numbers = #tpu.dot_dimension_numbers<[1], [0], [0], [1], [0, 0, 1, 1], [], []>} : vector<1x8xf32>, vector<8x288xf32>, vector<1x288xf32> -> vector<1x288xf32>
    %cst_47 = arith.constant 0.000000e+00 : f32
    %45 = vector.broadcast %cst_47 : f32 to vector<1x288xf32>
    %46 = vector.broadcast %44 : vector<1x288xf32> to vector<6x288xf32>
    %47 = arith.subf %16, %46 : vector<6x288xf32>
    %48 = arith.mulf %47, %47 : vector<6x288xf32>
    %cst_48 = arith.constant dense<0.000000e+00> : vector<288xf32>
    %49 = vector.multi_reduction <add>, %48, %cst_48 [0] : vector<6x288xf32> to vector<288xf32>
    %50 = vector.shape_cast %49 : vector<288xf32> to vector<1x288xf32>
    %51 = arith.addf %45, %50 : vector<1x288xf32>
    %52 = vector.broadcast %44 : vector<1x288xf32> to vector<6x288xf32>
    %53 = arith.subf %33, %52 : vector<6x288xf32>
    %54 = arith.mulf %53, %53 : vector<6x288xf32>
    %cst_49 = arith.constant dense<0.000000e+00> : vector<288xf32>
    %55 = vector.multi_reduction <add>, %54, %cst_49 [0] : vector<6x288xf32> to vector<288xf32>
    %56 = vector.shape_cast %55 : vector<288xf32> to vector<1x288xf32>
    %57 = arith.addf %51, %56 : vector<1x288xf32>
    %cst_50 = arith.constant dense<0.000000e+00> : vector<1x8xf32>
    %58 = tpu.matmul %57, %34, %cst_50 {dimension_numbers = #tpu.dot_dimension_numbers<[1], [0], [0], [1], [0, 0, 1, 1], [], []>} : vector<1x288xf32>, vector<288x8xf32>, vector<1x8xf32> -> vector<1x8xf32>
    %cst_51 = arith.constant 0.00231481483 : f32
    %59 = vector.broadcast %cst_51 : f32 to vector<1x8xf32>
    %60 = arith.mulf %58, %59 : vector<1x8xf32>
    %c0_52 = arith.constant 0 : index
    %c0_53 = arith.constant 0 : index
    %61 = vector.load %arg4[%c0_52, %c0_53] : memref<1x8xf32, #tpu.memory_space<vmem>>, vector<1x8xf32>
    %cst_54 = arith.constant 9.99999974E-6 : f32
    %62 = vector.broadcast %cst_54 : f32 to vector<1x8xf32>
    %63 = arith.addf %60, %62 : vector<1x8xf32>
    %64 = math.sqrt %63 : vector<1x8xf32>
    %65 = arith.divf %61, %64 : vector<1x8xf32>
    %c0_55 = arith.constant 0 : index
    %c0_56 = arith.constant 0 : index
    %66 = vector.load %arg5[%c0_55, %c0_56] : memref<1x8xf32, #tpu.memory_space<vmem>>, vector<1x8xf32>
    %67 = arith.mulf %43, %65 : vector<1x8xf32>
    %68 = arith.subf %66, %67 : vector<1x8xf32>
    %cst_57 = arith.constant dense<0.000000e+00> : vector<1x288xf32>
    %69 = tpu.matmul %65, %35, %cst_57 {dimension_numbers = #tpu.dot_dimension_numbers<[1], [0], [0], [1], [0, 0, 1, 1], [], []>} : vector<1x8xf32>, vector<8x288xf32>, vector<1x288xf32> -> vector<1x288xf32>
    %cst_58 = arith.constant dense<0.000000e+00> : vector<1x288xf32>
    %70 = tpu.matmul %68, %35, %cst_58 {dimension_numbers = #tpu.dot_dimension_numbers<[1], [0], [0], [1], [0, 0, 1, 1], [], []>} : vector<1x8xf32>, vector<8x288xf32>, vector<1x288xf32> -> vector<1x288xf32>
    %71 = vector.broadcast %69 : vector<1x288xf32> to vector<6x288xf32>
    %72 = arith.mulf %16, %71 : vector<6x288xf32>
    %73 = vector.broadcast %70 : vector<1x288xf32> to vector<6x288xf32>
    %74 = arith.addf %72, %73 : vector<6x288xf32>
    %cst_59 = arith.constant 0.000000e+00 : f32
    %75 = vector.broadcast %cst_59 : f32 to vector<6x288xf32>
    %76 = arith.maximumf %74, %75 : vector<6x288xf32>
    %c0_60 = arith.constant 0 : index
    %c0_61 = arith.constant 0 : index
    %77 = vector.load %arg6[%c0_60, %c0_61] : memref<12x288xf32, #tpu.memory_space<vmem>>, vector<6x288xf32>
    tpu.vector_store %arg6[%c0_60, %c0_61], %76 {strides = array<i32>} : memref<12x288xf32, #tpu.memory_space<vmem>>, vector<6x288xf32>,
    %78 = vector.broadcast %69 : vector<1x288xf32> to vector<6x288xf32>
    %79 = arith.mulf %33, %78 : vector<6x288xf32>
    %80 = vector.broadcast %70 : vector<1x288xf32> to vector<6x288xf32>
    %81 = arith.addf %79, %80 : vector<6x288xf32>
    %cst_62 = arith.constant 0.000000e+00 : f32
    %82 = vector.broadcast %cst_62 : f32 to vector<6x288xf32>
    %83 = arith.maximumf %81, %82 : vector<6x288xf32>
    %c6 = arith.constant 6 : index
    %c0_63 = arith.constant 0 : index
    %84 = vector.load %arg6[%c6, %c0_63] : memref<12x288xf32, #tpu.memory_space<vmem>>, vector<6x288xf32>
    tpu.vector_store %arg6[%c6, %c0_63], %83 {strides = array<i32>} : memref<12x288xf32, #tpu.memory_space<vmem>>, vector<6x288xf32>,
    return
  }
}

</mosaic_0001>

<llo_original>
// kernel: conv3d_block_forward.1
$region0: #{conv3d_block_forward.1}
  #allocation0 [shape = 'u32[]', space=smem, size = 0x4, offset = 0x4, fixed_abs, tag = 'smem constant byte address 0x4 - core index']
  #allocation1 [shape = 'u32[144,128]{1,0:T(1,128)}', space=vmem, size = 0x12000, scoped, tag = 'internal scratch']
  %s0 = inlined_call_operand.vmem [shape: f32[2,8,256], index: 0, kind: input, shape index: {}]
  %s1 = inlined_call_operand.vmem [shape: f32[3,256,288], index: 1, kind: input, shape index: {}]
  %s2 = inlined_call_operand.vmem [shape: f32[288,8], index: 2, kind: input, shape index: {}]
  %s3 = inlined_call_operand.vmem [shape: f32[8,288], index: 3, kind: input, shape index: {}]
  %s4 = inlined_call_operand.vmem [shape: f32[1,8], index: 4, kind: input, shape index: {}]
  %s5 = inlined_call_operand.vmem [shape: f32[1,8], index: 5, kind: input, shape index: {}]
  %s6 = inlined_call_operand.vmem [shape: f32[12,288], index: 6, kind: output, shape index: {}]
  %s7 = sld [smem:[#allocation0]]
  $region34: #{conv3d_block_forward.1} parent=0
    _
  %s9 = ssub.s32 1, %s7
  %s10 = scalar_select 0, %s9, %s7
  // Predicated region
  $region2: #{conv3d_block_forward.1} parent=0 // pred_check
    _
  $region3: #{conv3d_block_forward.1} parent=0 // pred_check_branch
    %12 = sbr.rel (0) target = $region5
  $region4: #{conv3d_block_forward.1} parent=0 // pred_region
    _
  $region5: #{conv3d_block_forward.1} parent=0 // pred_fallthru
    _
  // Predicated region
  $region6: #{conv3d_block_forward.1} parent=0 // pred_check
    _
  $region7: #{conv3d_block_forward.1} parent=0 // pred_check_branch
    %14 = sbr.rel (0) target = $region9
  $region8: #{conv3d_block_forward.1} parent=0 // pred_region
    _
  $region9: #{conv3d_block_forward.1} parent=0 // pred_fallthru
    _
  // Predicated region
  $region10: #{conv3d_block_forward.1} parent=0 // pred_check
    _
  $region11: #{conv3d_block_forward.1} parent=0 // pred_check_branch
    %16 = sbr.rel (0) target = $region13
  $region12: #{conv3d_block_forward.1} parent=0 // pred_region
    _
  $region13: #{conv3d_block_forward.1} parent=0 // pred_fallthru
    _
  // Predicated region
  $region14: #{conv3d_block_forward.1} parent=0 // pred_check
    _
  $region15: #{conv3d_block_forward.1} parent=0 // pred_check_branch
    %18 = sbr.rel (0) target = $region17
  $region16: #{conv3d_block_forward.1} parent=0 // pred_region
    _
  $region17: #{conv3d_block_forward.1} parent=0 // pred_fallthru
    _
  // Predicated region
  $region18: #{conv3d_block_forward.1} parent=0 // pred_check
    _
  $region19: #{conv3d_block_forward.1} parent=0 // pred_check_branch
    %20 = sbr.rel (0) target = $region21
  $region20: #{conv3d_block_forward.1} parent=0 // pred_region
    _
  $region21: #{conv3d_block_forward.1} parent=0 // pred_fallthru
    _
  // Predicated region
  $region22: #{conv3d_block_forward.1} parent=0 // pred_check
    _
  $region23: #{conv3d_block_forward.1} parent=0 // pred_check_branch
    %22 = sbr.rel (0) target = $region25
  $region24: #{conv3d_block_forward.1} parent=0 // pred_region
    _
  $region25: #{conv3d_block_forward.1} parent=0 // pred_fallthru
    _
  %v23 = vld [vmem:[%s0] sm:$0x3f]
  %v24 = vld [vmem:[%s0 + $0x8] sm:$0x3f]
  %v25 = vld [vmem:[%s1] sm:$0xff]
  %v26 = vld [vmem:[%s1 + $0x8] sm:$0xff]
  %v27 = vld [vmem:[%s1 + $0x10] sm:$0xff]
  %v28 = vld [vmem:[%s1 + $0x18] sm:$0xff]
  %v29 = vld [vmem:[%s1 + $0x20] sm:$0xff]
  %v30 = vld [vmem:[%s1 + $0x28] sm:$0xff]
  %v31 = vld [vmem:[%s1 + $0x30] sm:$0xff]
  %v32 = vld [vmem:[%s1 + $0x38] sm:$0xff]
  %v33 = vld [vmem:[%s1 + $0x40] sm:$0xff]
  %v34 = vld [vmem:[%s1 + $0x48] sm:$0xff]
  %v35 = vld [vmem:[%s1 + $0x50] sm:$0xff]
  %v36 = vld [vmem:[%s1 + $0x58] sm:$0xff]
  %v37 = vld [vmem:[%s1 + $0x60] sm:$0xff]
  %v38 = vld [vmem:[%s1 + $0x68] sm:$0xff]
  %v39 = vld [vmem:[%s1 + $0x70] sm:$0xff]
  %v40 = vld [vmem:[%s1 + $0x78] sm:$0xff]
  %v41 = vld [vmem:[%s1 + $0x80] sm:$0xff]
  %v42 = vld [vmem:[%s1 + $0x88] sm:$0xff]
  %v43 = vld [vmem:[%s1 + $0x90] sm:$0xff]
  %v44 = vld [vmem:[%s1 + $0x98] sm:$0xff]
  %v45 = vld [vmem:[%s1 + $0xa0] sm:$0xff]
  %v46 = vld [vmem:[%s1 + $0xa8] sm:$0xff]
  %v47 = vld [vmem:[%s1 + $0xb0] sm:$0xff]
  %v48 = vld [vmem:[%s1 + $0xb8] sm:$0xff]
  %v49 = vld [vmem:[%s1 + $0xc0] sm:$0xff]
  %v50 = vld [vmem:[%s1 + $0xc8] sm:$0xff]
  %v51 = vld [vmem:[%s1 + $0xd0] sm:$0xff]
  %v52 = vld [vmem:[%s1 + $0xd8] sm:$0xff]
  %v53 = vld [vmem:[%s1 + $0xe0] sm:$0xff]
  %v54 = vld [vmem:[%s1 + $0xe8] sm:$0xff]
  %v55 = vld [vmem:[%s1 + $0xf0] sm:$0xff]
  %v56 = vld [vmem:[%s1 + $0xf8] sm:$0xff]
  %v57 = vld [vmem:[%s1 + $0x100] sm:$0xff]
  %v58 = vld [vmem:[%s1 + $0x108] sm:$0xff]
  %v59 = vld [vmem:[%s1 + $0x110] sm:$0xff]
  %v60 = vld [vmem:[%s1 + $0x118] sm:$0xff]
  %v61 = vld [vmem:[%s1 + $0x120] sm:$0xff]
  %v62 = vld [vmem:[%s1 + $0x128] sm:$0xff]
  %v63 = vld [vmem:[%s1 + $0x130] sm:$0xff]
  %v64 = vld [vmem:[%s1 + $0x138] sm:$0xff]
  %v65 = vld [vmem:[%s1 + $0x140] sm:$0xff]
  %v66 = vld [vmem:[%s1 + $0x148] sm:$0xff]
  %v67 = vld [vmem:[%s1 + $0x150] sm:$0xff]
  %v68 = vld [vmem:[%s1 + $0x158] sm:$0xff]
  %v69 = vld [vmem:[%s1 + $0x160] sm:$0xff]
  %v70 = vld [vmem:[%s1 + $0x168] sm:$0xff]
  %v71 = vld [vmem:[%s1 + $0x170] sm:$0xff]
  %v72 = vld [vmem:[%s1 + $0x178] sm:$0xff]
  %v73 = vld [vmem:[%s1 + $0x180] sm:$0xff]
  %v74 = vld [vmem:[%s1 + $0x188] sm:$0xff]
  %v75 = vld [vmem:[%s1 + $0x190] sm:$0xff]
  %v76 = vld [vmem:[%s1 + $0x198] sm:$0xff]
  %v77 = vld [vmem:[%s1 + $0x1a0] sm:$0xff]
  %v78 = vld [vmem:[%s1 + $0x1a8] sm:$0xff]
  %v79 = vld [vmem:[%s1 + $0x1b0] sm:$0xff]
  %v80 = vld [vmem:[%s1 + $0x1b8] sm:$0xff]
  %v81 = vld [vmem:[%s1 + $0x1c0] sm:$0xff]
  %v82 = vld [vmem:[%s1 + $0x1c8] sm:$0xff]
  %v83 = vld [vmem:[%s1 + $0x1d0] sm:$0xff]
  %v84 = vld [vmem:[%s1 + $0x1d8] sm:$0xff]
  %v85 = vld [vmem:[%s1 + $0x1e0] sm:$0xff]
  %v86 = vld [vmem:[%s1 + $0x1e8] sm:$0xff]
  %v87 = vld [vmem:[%s1 + $0x1f0] sm:$0xff]
  %v88 = vld [vmem:[%s1 + $0x1f8] sm:$0xff]
  %v89 = vld [vmem:[%s1 + $0x200] sm:$0xff]
  %v90 = vld [vmem:[%s1 + $0x208] sm:$0xff]
  %v91 = vld [vmem:[%s1 + $0x210] sm:$0xff]
  %v92 = vld [vmem:[%s1 + $0x218] sm:$0xff]
  %v93 = vld [vmem:[%s1 + $0x220] sm:$0xff]
  %v94 = vld [vmem:[%s1 + $0x228] sm:$0xff]
  %v95 = vld [vmem:[%s1 + $0x230] sm:$0xff]
  %v96 = vld [vmem:[%s1 + $0x238] sm:$0xff]
  %v97 = vld [vmem:[%s1 + $0x240] sm:$0xff]
  %v98 = vld [vmem:[%s1 + $0x248] sm:$0xff]
  %v99 = vld [vmem:[%s1 + $0x250] sm:$0xff]
  %v100 = vld [vmem:[%s1 + $0x258] sm:$0xff]
  %v101 = vld [vmem:[%s1 + $0x260] sm:$0xff]
  %v102 = vld [vmem:[%s1 + $0x268] sm:$0xff]
  %v103 = vld [vmem:[%s1 + $0x270] sm:$0xff]
  %v104 = vld [vmem:[%s1 + $0x278] sm:$0xff]
  %v105 = vld [vmem:[%s1 + $0x280] sm:$0xff]
  %v106 = vld [vmem:[%s1 + $0x288] sm:$0xff]
  %v107 = vld [vmem:[%s1 + $0x290] sm:$0xff]
  %v108 = vld [vmem:[%s1 + $0x298] sm:$0xff]
  %v109 = vld [vmem:[%s1 + $0x2a0] sm:$0xff]
  %v110 = vld [vmem:[%s1 + $0x2a8] sm:$0xff]
  %v111 = vld [vmem:[%s1 + $0x2b0] sm:$0xff]
  %v112 = vld [vmem:[%s1 + $0x2b8] sm:$0xff]
  %v113 = vld [vmem:[%s1 + $0x2c0] sm:$0xff]
  %v114 = vld [vmem:[%s1 + $0x2c8] sm:$0xff]
  %v115 = vld [vmem:[%s1 + $0x2d0] sm:$0xff]
  %v116 = vld [vmem:[%s1 + $0x2d8] sm:$0xff]
  %v117 = vld [vmem:[%s1 + $0x2e0] sm:$0xff]
  %v118 = vld [vmem:[%s1 + $0x2e8] sm:$0xff]
  %v119 = vld [vmem:[%s1 + $0x2f0] sm:$0xff]
  %v120 = vld [vmem:[%s1 + $0x2f8] sm:$0xff]
  %v121 = vld [vmem:[%s0] sm:$0x7e]
  %v122 = vld [vmem:[%s0 + $0x8] sm:$0x7e]
  %s123 = scalar_lea.vmem %s1, 768
  %v124 = vld [vmem:[%s123] sm:$0xff]
  %v125 = vld [vmem:[%s123 + $0x8] sm:$0xff]
  %v126 = vld [vmem:[%s123 + $0x10] sm:$0xff]
  %v127 = vld [vmem:[%s123 + $0x18] sm:$0xff]
  %v128 = vld [vmem:[%s123 + $0x20] sm:$0xff]
  %v129 = vld [vmem:[%s123 + $0x28] sm:$0xff]
  %v130 = vld [vmem:[%s123 + $0x30] sm:$0xff]
  %v131 = vld [vmem:[%s123 + $0x38] sm:$0xff]
  %v132 = vld [vmem:[%s123 + $0x40] sm:$0xff]
  %v133 = vld [vmem:[%s123 + $0x48] sm:$0xff]
  %v134 = vld [vmem:[%s123 + $0x50] sm:$0xff]
  %v135 = vld [vmem:[%s123 + $0x58] sm:$0xff]
  %v136 = vld [vmem:[%s123 + $0x60] sm:$0xff]
  %v137 = vld [vmem:[%s123 + $0x68] sm:$0xff]
  %v138 = vld [vmem:[%s123 + $0x70] sm:$0xff]
  %v139 = vld [vmem:[%s123 + $0x78] sm:$0xff]
  %v140 = vld [vmem:[%s123 + $0x80] sm:$0xff]
  %v141 = vld [vmem:[%s123 + $0x88] sm:$0xff]
  %v142 = vld [vmem:[%s123 + $0x90] sm:$0xff]
  %v143 = vld [vmem:[%s123 + $0x98] sm:$0xff]
  %v144 = vld [vmem:[%s123 + $0xa0] sm:$0xff]
  %v145 = vld [vmem:[%s123 + $0xa8] sm:$0xff]
  %v146 = vld [vmem:[%s123 + $0xb0] sm:$0xff]
  %v147 = vld [vmem:[%s123 + $0xb8] sm:$0xff]
  %v148 = vld [vmem:[%s123 + $0xc0] sm:$0xff]
  %v149 = vld [vmem:[%s123 + $0xc8] sm:$0xff]
  %v150 = vld [vmem:[%s123 + $0xd0] sm:$0xff]
  %v151 = vld [vmem:[%s123 + $0xd8] sm:$0xff]
  %v152 = vld [vmem:[%s123 + $0xe0] sm:$0xff]
  %v153 = vld [vmem:[%s123 + $0xe8] sm:$0xff]
  %v154 = vld [vmem:[%s123 + $0xf0] sm:$0xff]
  %v155 = vld [vmem:[%s123 + $0xf8] sm:$0xff]
  %v156 = vld [vmem:[%s123 + $0x100] sm:$0xff]
  %v157 = vld [vmem:[%s123 + $0x108] sm:$0xff]
  %v158 = vld [vmem:[%s123 + $0x110] sm:$0xff]
  %v159 = vld [vmem:[%s123 + $0x118] sm:$0xff]
  %v160 = vld [vmem:[%s123 + $0x120] sm:$0xff]
  %v161 = vld [vmem:[%s123 + $0x128] sm:$0xff]
  %v162 = vld [vmem:[%s123 + $0x130] sm:$0xff]
  %v163 = vld [vmem:[%s123 + $0x138] sm:$0xff]
  %v164 = vld [vmem:[%s123 + $0x140] sm:$0xff]
  %v165 = vld [vmem:[%s123 + $0x148] sm:$0xff]
  %v166 = vld [vmem:[%s123 + $0x150] sm:$0xff]
  %v167 = vld [vmem:[%s123 + $0x158] sm:$0xff]
  %v168 = vld [vmem:[%s123 + $0x160] sm:$0xff]
  %v169 = vld [vmem:[%s123 + $0x168] sm:$0xff]
  %v170 = vld [vmem:[%s123 + $0x170] sm:$0xff]
  %v171 = vld [vmem:[%s123 + $0x178] sm:$0xff]
  %v172 = vld [vmem:[%s123 + $0x180] sm:$0xff]
  %v173 = vld [vmem:[%s123 + $0x188] sm:$0xff]
  %v174 = vld [vmem:[%s123 + $0x190] sm:$0xff]
  %v175 = vld [vmem:[%s123 + $0x198] sm:$0xff]
  %v176 = vld [vmem:[%s123 + $0x1a0] sm:$0xff]
  %v177 = vld [vmem:[%s123 + $0x1a8] sm:$0xff]
  %v178 = vld [vmem:[%s123 + $0x1b0] sm:$0xff]
  %v179 = vld [vmem:[%s123 + $0x1b8] sm:$0xff]
  %v180 = vld [vmem:[%s123 + $0x1c0] sm:$0xff]
  %v181 = vld [vmem:[%s123 + $0x1c8] sm:$0xff]
  %v182 = vld [vmem:[%s123 + $0x1d0] sm:$0xff]
  %v183 = vld [vmem:[%s123 + $0x1d8] sm:$0xff]
  %v184 = vld [vmem:[%s123 + $0x1e0] sm:$0xff]
  %v185 = vld [vmem:[%s123 + $0x1e8] sm:$0xff]
  %v186 = vld [vmem:[%s123 + $0x1f0] sm:$0xff]
  %v187 = vld [vmem:[%s123 + $0x1f8] sm:$0xff]
  %v188 = vld [vmem:[%s123 + $0x200] sm:$0xff]
  %v189 = vld [vmem:[%s123 + $0x208] sm:$0xff]
  %v190 = vld [vmem:[%s123 + $0x210] sm:$0xff]
  %v191 = vld [vmem:[%s123 + $0x218] sm:$0xff]
  %v192 = vld [vmem:[%s123 + $0x220] sm:$0xff]
  %v193 = vld [vmem:[%s123 + $0x228] sm:$0xff]
  %v194 = vld [vmem:[%s123 + $0x230] sm:$0xff]
  %v195 = vld [vmem:[%s123 + $0x238] sm:$0xff]
  %v196 = vld [vmem:[%s123 + $0x240] sm:$0xff]
  %v197 = vld [vmem:[%s123 + $0x248] sm:$0xff]
  %v198 = vld [vmem:[%s123 + $0x250] sm:$0xff]
  %v199 = vld [vmem:[%s123 + $0x258] sm:$0xff]
  %v200 = vld [vmem:[%s123 + $0x260] sm:$0xff]
  %v201 = vld [vmem:[%s123 + $0x268] sm:$0xff]
  %v202 = vld [vmem:[%s123 + $0x270] sm:$0xff]
  %v203 = vld [vmem:[%s123 + $0x278] sm:$0xff]
  %v204 = vld [vmem:[%s123 + $0x280] sm:$0xff]
  %v205 = vld [vmem:[%s123 + $0x288] sm:$0xff]
  %v206 = vld [vmem:[%s123 + $0x290] sm:$0xff]
  %v207 = vld [vmem:[%s123 + $0x298] sm:$0xff]
  %v208 = vld [vmem:[%s123 + $0x2a0] sm:$0xff]
  %v209 = vld [vmem:[%s123 + $0x2a8] sm:$0xff]
  %v210 = vld [vmem:[%s123 + $0x2b0] sm:$0xff]
  %v211 = vld [vmem:[%s123 + $0x2b8] sm:$0xff]
  %v212 = vld [vmem:[%s123 + $0x2c0] sm:$0xff]
  %v213 = vld [vmem:[%s123 + $0x2c8] sm:$0xff]
  %v214 = vld [vmem:[%s123 + $0x2d0] sm:$0xff]
  %v215 = vld [vmem:[%s123 + $0x2d8] sm:$0xff]
  %v216 = vld [vmem:[%s123 + $0x2e0] sm:$0xff]
  %v217 = vld [vmem:[%s123 + $0x2e8] sm:$0xff]
  %v218 = vld [vmem:[%s123 + $0x2f0] sm:$0xff]
  %v219 = vld [vmem:[%s123 + $0x2f8] sm:$0xff]
  %v222 = vrot.slane %v121, 1
  %v223 = vrot.slane %v122, 1
  %226 = vmatprep.subr.mxu0 %v170
  %227 = vmatpush1.msra.mxu0 %v169
  %228 = vmatprep.subr.mxu0 %v167
  %229 = vmatpush1.msra.mxu0 %v166
  %230 = vmatprep.subr.mxu0 %v164
  %231 = vmatpush1.msra.mxu0 %v163
  %232 = vmatprep.subr.mxu0 %v161
  %233 = vmatpush1.msra.mxu0 %v160
  %234 = vmatprep.subr.mxu0 %v158
  %235 = vmatpush1.msra.mxu0 %v157
  %236 = vmatprep.subr.mxu0 %v155
  %237 = vmatpush1.msra.mxu0 %v154
  %238 = vmatprep.subr.mxu0 %v152
  %239 = vmatpush1.msra.mxu0 %v151
  %240 = vmatprep.subr.mxu0 %v149
  %241 = vmatpush1.msra.mxu0 %v148
  %242 = vmatprep.subr.mxu0 %v146
  %243 = vmatpush1.msra.mxu0 %v145
  %244 = vmatprep.subr.mxu0 %v143
  %245 = vmatpush1.msra.mxu0 %v142
  %246 = vmatprep.subr.mxu0 %v140
  %247 = vmatpush1.msra.mxu0 %v139
  %248 = vmatprep.subr.mxu0 %v137
  %249 = vmatpush1.msra.mxu0 %v136
  %250 = vmatprep.subr.mxu0 %v134
  %251 = vmatpush1.msra.mxu0 %v133
  %252 = vmatprep.subr.mxu0 %v131
  %253 = vmatpush1.msra.mxu0 %v130
  %254 = vmatprep.subr.mxu0 %v128
  %255 = vmatpush1.msra.mxu0 %v127
  %256 = vmatprep.subr.mxu0 %v125
  %257 = vmatpush1.msra.mxu0 %v124
  %258 = vmatprep.subr.mxu0 %v218
  %259 = vmatpush2.msra.mxu0 %v217
  %260 = vmatprep.subr.mxu0 %v215
  %261 = vmatpush2.msra.mxu0 %v214
  %262 = vmatprep.subr.mxu0 %v212
  %263 = vmatpush2.msra.mxu0 %v211
  %264 = vmatprep.subr.mxu0 %v209
  %265 = vmatpush2.msra.mxu0 %v208
  %266 = vmatprep.subr.mxu0 %v206
  %267 = vmatpush2.msra.mxu0 %v205
  %268 = vmatprep.subr.mxu0 %v203
  %269 = vmatpush2.msra.mxu0 %v202
  %270 = vmatprep.subr.mxu0 %v200
  %271 = vmatpush2.msra.mxu0 %v199
  %272 = vmatprep.subr.mxu0 %v197
  %273 = vmatpush2.msra.mxu0 %v196
  %274 = vmatprep.subr.mxu0 %v194
  %275 = vmatpush2.msra.mxu0 %v193
  %276 = vmatprep.subr.mxu0 %v191
  %277 = vmatpush2.msra.mxu0 %v190
  %278 = vmatprep.subr.mxu0 %v188
  %279 = vmatpush2.msra.mxu0 %v187
  %280 = vmatprep.subr.mxu0 %v185
  %281 = vmatpush2.msra.mxu0 %v184
  %282 = vmatprep.subr.mxu0 %v182
  %283 = vmatpush2.msra.mxu0 %v181
  %284 = vmatprep.subr.mxu0 %v179
  %285 = vmatpush2.msra.mxu0 %v178
  %286 = vmatprep.subr.mxu0 %v176
  %287 = vmatpush2.msra.mxu0 %v175
  %288 = vmatprep.subr.mxu0 %v173
  %289 = vmatpush2.msra.mxu0 %v172
  %290 = vmatprep.mubr.f32.mxu0 %v223
  %291 = vmatmul.mubr.f32.gmra.mxu0 %v222
  %v292 = vpop.f32.mrf.mxu0
  %v293 = vadd.f32 0.0, %v292
  %v294 = vpop.f32.mrf.mxu0
  %v295 = vadd.f32 0.0, %v294
  %296 = vdwg.mxu0
  %297 = vmatprep.subr.mxu0 0.0
  %298 = vmatpush1.msra.mxu0 %v171
  %299 = vmatprep.subr.mxu0 0.0
  %300 = vmatpush1.msra.mxu0 %v168
  %301 = vmatprep.subr.mxu0 0.0
  %302 = vmatpush1.msra.mxu0 %v165
  %303 = vmatprep.subr.mxu0 0.0
  %304 = vmatpush1.msra.mxu0 %v162
  %305 = vmatprep.subr.mxu0 0.0
  %306 = vmatpush1.msra.mxu0 %v159
  %307 = vmatprep.subr.mxu0 0.0
  %308 = vmatpush1.msra.mxu0 %v156
  %309 = vmatprep.subr.mxu0 0.0
  %310 = vmatpush1.msra.mxu0 %v153
  %311 = vmatprep.subr.mxu0 0.0
  %312 = vmatpush1.msra.mxu0 %v150
  %313 = vmatprep.subr.mxu0 0.0
  %314 = vmatpush1.msra.mxu0 %v147
  %315 = vmatprep.subr.mxu0 0.0
  %316 = vmatpush1.msra.mxu0 %v144
  %317 = vmatprep.subr.mxu0 0.0
  %318 = vmatpush1.msra.mxu0 %v141
  %319 = vmatprep.subr.mxu0 0.0
  %320 = vmatpush1.msra.mxu0 %v138
  %321 = vmatprep.subr.mxu0 0.0
  %322 = vmatpush1.msra.mxu0 %v135
  %323 = vmatprep.subr.mxu0 0.0
  %324 = vmatpush1.msra.mxu0 %v132
  %325 = vmatprep.subr.mxu0 0.0
  %326 = vmatpush1.msra.mxu0 %v129
  %327 = vmatprep.subr.mxu0 0.0
  %328 = vmatpush1.msra.mxu0 %v126
  %329 = vmatprep.subr.mxu0 0.0
  %330 = vmatpush2.msra.mxu0 %v219
  %331 = vmatprep.subr.mxu0 0.0
  %332 = vmatpush2.msra.mxu0 %v216
  %333 = vmatprep.subr.mxu0 0.0
  %334 = vmatpush2.msra.mxu0 %v213
  %335 = vmatprep.subr.mxu0 0.0
  %336 = vmatpush2.msra.mxu0 %v210
  %337 = vmatprep.subr.mxu0 0.0
  %338 = vmatpush2.msra.mxu0 %v207
  %339 = vmatprep.subr.mxu0 0.0
  %340 = vmatpush2.msra.mxu0 %v204
  %341 = vmatprep.subr.mxu0 0.0
  %342 = vmatpush2.msra.mxu0 %v201
  %343 = vmatprep.subr.mxu0 0.0
  %344 = vmatpush2.msra.mxu0 %v198
  %345 = vmatprep.subr.mxu0 0.0
  %346 = vmatpush2.msra.mxu0 %v195
  %347 = vmatprep.subr.mxu0 0.0
  %348 = vmatpush2.msra.mxu0 %v192
  %349 = vmatprep.subr.mxu0 0.0
  %350 = vmatpush2.msra.mxu0 %v189
  %351 = vmatprep.subr.mxu0 0.0
  %352 = vmatpush2.msra.mxu0 %v186
  %353 = vmatprep.subr.mxu0 0.0
  %354 = vmatpush2.msra.mxu0 %v183
  %355 = vmatprep.subr.mxu0 0.0
  %356 = vmatpush2.msra.mxu0 %v180
  %357 = vmatprep.subr.mxu0 0.0
  %358 = vmatpush2.msra.mxu0 %v177
  %359 = vmatprep.subr.mxu0 0.0
  %360 = vmatpush2.msra.mxu0 %v174
  %361 = vmatprep.mubr.f32.mxu0 %v223
  %362 = vmatmul.mubr.f32.gmra.mxu0 %v222
  %v363 = vpop.f32.mrf.mxu0
  %v364 = vadd.f32 0.0, %v363
  %v365 = vpop.f32.mrf.mxu0
  %366 = vdwg.mxu0
  %367 = vmatprep.subr.mxu0 %v71
  %368 = vmatpush1.msra.mxu0 %v70
  %369 = vmatprep.subr.mxu0 %v68
  %370 = vmatpush1.msra.mxu0 %v67
  %371 = vmatprep.subr.mxu0 %v65
  %372 = vmatpush1.msra.mxu0 %v64
  %373 = vmatprep.subr.mxu0 %v62
  %374 = vmatpush1.msra.mxu0 %v61
  %375 = vmatprep.subr.mxu0 %v59
  %376 = vmatpush1.msra.mxu0 %v58
  %377 = vmatprep.subr.mxu0 %v56
  %378 = vmatpush1.msra.mxu0 %v55
  %379 = vmatprep.subr.mxu0 %v53
  %380 = vmatpush1.msra.mxu0 %v52
  %381 = vmatprep.subr.mxu0 %v50
  %382 = vmatpush1.msra.mxu0 %v49
  %383 = vmatprep.subr.mxu0 %v47
  %384 = vmatpush1.msra.mxu0 %v46
  %385 = vmatprep.subr.mxu0 %v44
  %386 = vmatpush1.msra.mxu0 %v43
  %387 = vmatprep.subr.mxu0 %v41
  %388 = vmatpush1.msra.mxu0 %v40
  %389 = vmatprep.subr.mxu0 %v38
  %390 = vmatpush1.msra.mxu0 %v37
  %391 = vmatprep.subr.mxu0 %v35
  %392 = vmatpush1.msra.mxu0 %v34
  %393 = vmatprep.subr.mxu0 %v32
  %394 = vmatpush1.msra.mxu0 %v31
  %395 = vmatprep.subr.mxu0 %v29
  %396 = vmatpush1.msra.mxu0 %v28
  %397 = vmatprep.subr.mxu0 %v26
  %398 = vmatpush1.msra.mxu0 %v25
  %399 = vmatprep.subr.mxu0 %v119
  %400 = vmatpush2.msra.mxu0 %v118
  %401 = vmatprep.subr.mxu0 %v116
  %402 = vmatpush2.msra.mxu0 %v115
  %403 = vmatprep.subr.mxu0 %v113
  %404 = vmatpush2.msra.mxu0 %v112
  %405 = vmatprep.subr.mxu0 %v110
  %406 = vmatpush2.msra.mxu0 %v109
  %407 = vmatprep.subr.mxu0 %v107
  %408 = vmatpush2.msra.mxu0 %v106
  %409 = vmatprep.subr.mxu0 %v104
  %410 = vmatpush2.msra.mxu0 %v103
  %411 = vmatprep.subr.mxu0 %v101
  %412 = vmatpush2.msra.mxu0 %v100
  %413 = vmatprep.subr.mxu0 %v98
  %414 = vmatpush2.msra.mxu0 %v97
  %415 = vmatprep.subr.mxu0 %v95
  %416 = vmatpush2.msra.mxu0 %v94
  %417 = vmatprep.subr.mxu0 %v92
  %418 = vmatpush2.msra.mxu0 %v91
  %419 = vmatprep.subr.mxu0 %v89
  %420 = vmatpush2.msra.mxu0 %v88
  %421 = vmatprep.subr.mxu0 %v86
  %422 = vmatpush2.msra.mxu0 %v85
  %423 = vmatprep.subr.mxu0 %v83
  %424 = vmatpush2.msra.mxu0 %v82
  %425 = vmatprep.subr.mxu0 %v80
  %426 = vmatpush2.msra.mxu0 %v79
  %427 = vmatprep.subr.mxu0 %v77
  %428 = vmatpush2.msra.mxu0 %v76
  %429 = vmatprep.subr.mxu0 %v74
  %430 = vmatpush2.msra.mxu0 %v73
  %431 = vmatprep.mubr.f32.mxu0 %v24
  %432 = vmatmul.mubr.f32.gmra.mxu0 %v23
  %v433 = vpop.f32.mrf.mxu0
  %v434 = vadd.f32 %v293, %v433
  %v435 = vpop.f32.mrf.mxu0
  %v436 = vadd.f32 %v295, %v435
  %437 = vdwg.mxu0
  %438 = vmatprep.subr.mxu0 0.0
  %439 = vmatpush1.msra.mxu0 %v72
  %440 = vmatprep.subr.mxu0 0.0
  %441 = vmatpush1.msra.mxu0 %v69
  %442 = vmatprep.subr.mxu0 0.0
  %443 = vmatpush1.msra.mxu0 %v66
  %444 = vmatprep.subr.mxu0 0.0
  %445 = vmatpush1.msra.mxu0 %v63
  %446 = vmatprep.subr.mxu0 0.0
  %447 = vmatpush1.msra.mxu0 %v60
  %448 = vmatprep.subr.mxu0 0.0
  %449 = vmatpush1.msra.mxu0 %v57
  %450 = vmatprep.subr.mxu0 0.0
  %451 = vmatpush1.msra.mxu0 %v54
  %452 = vmatprep.subr.mxu0 0.0
  %453 = vmatpush1.msra.mxu0 %v51
  %454 = vmatprep.subr.mxu0 0.0
  %455 = vmatpush1.msra.mxu0 %v48
  %456 = vmatprep.subr.mxu0 0.0
  %457 = vmatpush1.msra.mxu0 %v45
  %458 = vmatprep.subr.mxu0 0.0
  %459 = vmatpush1.msra.mxu0 %v42
  %460 = vmatprep.subr.mxu0 0.0
  %461 = vmatpush1.msra.mxu0 %v39
  %462 = vmatprep.subr.mxu0 0.0
  %463 = vmatpush1.msra.mxu0 %v36
  %464 = vmatprep.subr.mxu0 0.0
  %465 = vmatpush1.msra.mxu0 %v33
  %466 = vmatprep.subr.mxu0 0.0
  %467 = vmatpush1.msra.mxu0 %v30
  %468 = vmatprep.subr.mxu0 0.0
  %469 = vmatpush1.msra.mxu0 %v27
  %470 = vmatprep.subr.mxu0 0.0
  %471 = vmatpush2.msra.mxu0 %v120
  %472 = vmatprep.subr.mxu0 0.0
  %473 = vmatpush2.msra.mxu0 %v117
  %474 = vmatprep.subr.mxu0 0.0
  %475 = vmatpush2.msra.mxu0 %v114
  %476 = vmatprep.subr.mxu0 0.0
  %477 = vmatpush2.msra.mxu0 %v111
  %478 = vmatprep.subr.mxu0 0.0
  %479 = vmatpush2.msra.mxu0 %v108
  %480 = vmatprep.subr.mxu0 0.0
  %481 = vmatpush2.msra.mxu0 %v105
  %482 = vmatprep.subr.mxu0 0.0
  %483 = vmatpush2.msra.mxu0 %v102
  %484 = vmatprep.subr.mxu0 0.0
  %485 = vmatpush2.msra.mxu0 %v99
  %486 = vmatprep.subr.mxu0 0.0
  %487 = vmatpush2.msra.mxu0 %v96
  %488 = vmatprep.subr.mxu0 0.0
  %489 = vmatpush2.msra.mxu0 %v93
  %490 = vmatprep.subr.mxu0 0.0
  %491 = vmatpush2.msra.mxu0 %v90
  %492 = vmatprep.subr.mxu0 0.0
  %493 = vmatpush2.msra.mxu0 %v87
  %494 = vmatprep.subr.mxu0 0.0
  %495 = vmatpush2.msra.mxu0 %v84
  %496 = vmatprep.subr.mxu0 0.0
  %497 = vmatpush2.msra.mxu0 %v81
  %498 = vmatprep.subr.mxu0 0.0
  %499 = vmatpush2.msra.mxu0 %v78
  %500 = vmatprep.subr.mxu0 0.0
  %501 = vmatpush2.msra.mxu0 %v75
  %502 = vmatprep.mubr.f32.mxu0 %v24
  %503 = vmatmul.mubr.f32.gmra.mxu0 %v23
  %v504 = vpop.f32.mrf.mxu0
  %v505 = vadd.f32 %v364, %v504
  %v506 = vpop.f32.mrf.mxu0
  %507 = vdwg.mxu0
  %v508 = vld [vmem:[%s0] sm:$0xfc]
  %v509 = vld [vmem:[%s0 + $0x8] sm:$0xfc]
  %s510 = scalar_lea.vmem %s1, 1536
  %v511 = vld [vmem:[%s510] sm:$0xff]
  %v512 = vld [vmem:[%s510 + $0x8] sm:$0xff]
  %v513 = vld [vmem:[%s510 + $0x10] sm:$0xff]
  %v514 = vld [vmem:[%s510 + $0x18] sm:$0xff]
  %v515 = vld [vmem:[%s510 + $0x20] sm:$0xff]
  %v516 = vld [vmem:[%s510 + $0x28] sm:$0xff]
  %v517 = vld [vmem:[%s510 + $0x30] sm:$0xff]
  %v518 = vld [vmem:[%s510 + $0x38] sm:$0xff]
  %v519 = vld [vmem:[%s510 + $0x40] sm:$0xff]
  %v520 = vld [vmem:[%s510 + $0x48] sm:$0xff]
  %v521 = vld [vmem:[%s510 + $0x50] sm:$0xff]
  %v522 = vld [vmem:[%s510 + $0x58] sm:$0xff]
  %v523 = vld [vmem:[%s510 + $0x60] sm:$0xff]
  %v524 = vld [vmem:[%s510 + $0x68] sm:$0xff]
  %v525 = vld [vmem:[%s510 + $0x70] sm:$0xff]
  %v526 = vld [vmem:[%s510 + $0x78] sm:$0xff]
  %v527 = vld [vmem:[%s510 + $0x80] sm:$0xff]
  %v528 = vld [vmem:[%s510 + $0x88] sm:$0xff]
  %v529 = vld [vmem:[%s510 + $0x90] sm:$0xff]
  %v530 = vld [vmem:[%s510 + $0x98] sm:$0xff]
  %v531 = vld [vmem:[%s510 + $0xa0] sm:$0xff]
  %v532 = vld [vmem:[%s510 + $0xa8] sm:$0xff]
  %v533 = vld [vmem:[%s510 + $0xb0] sm:$0xff]
  %v534 = vld [vmem:[%s510 + $0xb8] sm:$0xff]
  %v535 = vld [vmem:[%s510 + $0xc0] sm:$0xff]
  %v536 = vld [vmem:[%s510 + $0xc8] sm:$0xff]
  %v537 = vld [vmem:[%s510 + $0xd0] sm:$0xff]
  %v538 = vld [vmem:[%s510 + $0xd8] sm:$0xff]
  %v539 = vld [vmem:[%s510 + $0xe0] sm:$0xff]
  %v540 = vld [vmem:[%s510 + $0xe8] sm:$0xff]
  %v541 = vld [vmem:[%s510 + $0xf0] sm:$0xff]
  %v542 = vld [vmem:[%s510 + $0xf8] sm:$0xff]
  %v543 = vld [vmem:[%s510 + $0x100] sm:$0xff]
  %v544 = vld [vmem:[%s510 + $0x108] sm:$0xff]
  %v545 = vld [vmem:[%s510 + $0x110] sm:$0xff]
  %v546 = vld [vmem:[%s510 + $0x118] sm:$0xff]
  %v547 = vld [vmem:[%s510 + $0x120] sm:$0xff]
  %v548 = vld [vmem:[%s510 + $0x128] sm:$0xff]
  %v549 = vld [vmem:[%s510 + $0x130] sm:$0xff]
  %v550 = vld [vmem:[%s510 + $0x138] sm:$0xff]
  %v551 = vld [vmem:[%s510 + $0x140] sm:$0xff]
  %v552 = vld [vmem:[%s510 + $0x148] sm:$0xff]
  %v553 = vld [vmem:[%s510 + $0x150] sm:$0xff]
  %v554 = vld [vmem:[%s510 + $0x158] sm:$0xff]
  %v555 = vld [vmem:[%s510 + $0x160] sm:$0xff]
  %v556 = vld [vmem:[%s510 + $0x168] sm:$0xff]
  %v557 = vld [vmem:[%s510 + $0x170] sm:$0xff]
  %v558 = vld [vmem:[%s510 + $0x178] sm:$0xff]
  %v559 = vld [vmem:[%s510 + $0x180] sm:$0xff]
  %v560 = vld [vmem:[%s510 + $0x188] sm:$0xff]
  %v561 = vld [vmem:[%s510 + $0x190] sm:$0xff]
  %v562 = vld [vmem:[%s510 + $0x198] sm:$0xff]
  %v563 = vld [vmem:[%s510 + $0x1a0] sm:$0xff]
  %v564 = vld [vmem:[%s510 + $0x1a8] sm:$0xff]
  %v565 = vld [vmem:[%s510 + $0x1b0] sm:$0xff]
  %v566 = vld [vmem:[%s510 + $0x1b8] sm:$0xff]
  %v567 = vld [vmem:[%s510 + $0x1c0] sm:$0xff]
  %v568 = vld [vmem:[%s510 + $0x1c8] sm:$0xff]
  %v569 = vld [vmem:[%s510 + $0x1d0] sm:$0xff]
  %v570 = vld [vmem:[%s510 + $0x1d8] sm:$0xff]
  %v571 = vld [vmem:[%s510 + $0x1e0] sm:$0xff]
  %v572 = vld [vmem:[%s510 + $0x1e8] sm:$0xff]
  %v573 = vld [vmem:[%s510 + $0x1f0] sm:$0xff]
  %v574 = vld [vmem:[%s510 + $0x1f8] sm:$0xff]
  %v575 = vld [vmem:[%s510 + $0x200] sm:$0xff]
  %v576 = vld [vmem:[%s510 + $0x208] sm:$0xff]
  %v577 = vld [vmem:[%s510 + $0x210] sm:$0xff]
  %v578 = vld [vmem:[%s510 + $0x218] sm:$0xff]
  %v579 = vld [vmem:[%s510 + $0x220] sm:$0xff]
  %v580 = vld [vmem:[%s510 + $0x228] sm:$0xff]
  %v581 = vld [vmem:[%s510 + $0x230] sm:$0xff]
  %v582 = vld [vmem:[%s510 + $0x238] sm:$0xff]
  %v583 = vld [vmem:[%s510 + $0x240] sm:$0xff]
  %v584 = vld [vmem:[%s510 + $0x248] sm:$0xff]
  %v585 = vld [vmem:[%s510 + $0x250] sm:$0xff]
  %v586 = vld [vmem:[%s510 + $0x258] sm:$0xff]
  %v587 = vld [vmem:[%s510 + $0x260] sm:$0xff]
  %v588 = vld [vmem:[%s510 + $0x268] sm:$0xff]
  %v589 = vld [vmem:[%s510 + $0x270] sm:$0xff]
  %v590 = vld [vmem:[%s510 + $0x278] sm:$0xff]
  %v591 = vld [vmem:[%s510 + $0x280] sm:$0xff]
  %v592 = vld [vmem:[%s510 + $0x288] sm:$0xff]
  %v593 = vld [vmem:[%s510 + $0x290] sm:$0xff]
  %v594 = vld [vmem:[%s510 + $0x298] sm:$0xff]
  %v595 = vld [vmem:[%s510 + $0x2a0] sm:$0xff]
  %v596 = vld [vmem:[%s510 + $0x2a8] sm:$0xff]
  %v597 = vld [vmem:[%s510 + $0x2b0] sm:$0xff]
  %v598 = vld [vmem:[%s510 + $0x2b8] sm:$0xff]
  %v599 = vld [vmem:[%s510 + $0x2c0] sm:$0xff]
  %v600 = vld [vmem:[%s510 + $0x2c8] sm:$0xff]
  %v601 = vld [vmem:[%s510 + $0x2d0] sm:$0xff]
  %v602 = vld [vmem:[%s510 + $0x2d8] sm:$0xff]
  %v603 = vld [vmem:[%s510 + $0x2e0] sm:$0xff]
  %v604 = vld [vmem:[%s510 + $0x2e8] sm:$0xff]
  %v605 = vld [vmem:[%s510 + $0x2f0] sm:$0xff]
  %v606 = vld [vmem:[%s510 + $0x2f8] sm:$0xff]
  %v609 = vrot.slane %v508, 2
  %v610 = vrot.slane %v509, 2
  %613 = vmatprep.subr.mxu0 %v557
  %614 = vmatpush1.msra.mxu0 %v556
  %615 = vmatprep.subr.mxu0 %v554
  %616 = vmatpush1.msra.mxu0 %v553
  %617 = vmatprep.subr.mxu0 %v551
  %618 = vmatpush1.msra.mxu0 %v550
  %619 = vmatprep.subr.mxu0 %v548
  %620 = vmatpush1.msra.mxu0 %v547
  %621 = vmatprep.subr.mxu0 %v545
  %622 = vmatpush1.msra.mxu0 %v544
  %623 = vmatprep.subr.mxu0 %v542
  %624 = vmatpush1.msra.mxu0 %v541
  %625 = vmatprep.subr.mxu0 %v539
  %626 = vmatpush1.msra.mxu0 %v538
  %627 = vmatprep.subr.mxu0 %v536
  %628 = vmatpush1.msra.mxu0 %v535
  %629 = vmatprep.subr.mxu0 %v533
  %630 = vmatpush1.msra.mxu0 %v532
  %631 = vmatprep.subr.mxu0 %v530
  %632 = vmatpush1.msra.mxu0 %v529
  %633 = vmatprep.subr.mxu0 %v527
  %634 = vmatpush1.msra.mxu0 %v526
  %635 = vmatprep.subr.mxu0 %v524
  %636 = vmatpush1.msra.mxu0 %v523
  %637 = vmatprep.subr.mxu0 %v521
  %638 = vmatpush1.msra.mxu0 %v520
  %639 = vmatprep.subr.mxu0 %v518
  %640 = vmatpush1.msra.mxu0 %v517
  %641 = vmatprep.subr.mxu0 %v515
  %642 = vmatpush1.msra.mxu0 %v514
  %643 = vmatprep.subr.mxu0 %v512
  %644 = vmatpush1.msra.mxu0 %v511
  %645 = vmatprep.subr.mxu0 %v605
  %646 = vmatpush2.msra.mxu0 %v604
  %647 = vmatprep.subr.mxu0 %v602
  %648 = vmatpush2.msra.mxu0 %v601
  %649 = vmatprep.subr.mxu0 %v599
  %650 = vmatpush2.msra.mxu0 %v598
  %651 = vmatprep.subr.mxu0 %v596
  %652 = vmatpush2.msra.mxu0 %v595
  %653 = vmatprep.subr.mxu0 %v593
  %654 = vmatpush2.msra.mxu0 %v592
  %655 = vmatprep.subr.mxu0 %v590
  %656 = vmatpush2.msra.mxu0 %v589
  %657 = vmatprep.subr.mxu0 %v587
  %658 = vmatpush2.msra.mxu0 %v586
  %659 = vmatprep.subr.mxu0 %v584
  %660 = vmatpush2.msra.mxu0 %v583
  %661 = vmatprep.subr.mxu0 %v581
  %662 = vmatpush2.msra.mxu0 %v580
  %663 = vmatprep.subr.mxu0 %v578
  %664 = vmatpush2.msra.mxu0 %v577
  %665 = vmatprep.subr.mxu0 %v575
  %666 = vmatpush2.msra.mxu0 %v574
  %667 = vmatprep.subr.mxu0 %v572
  %668 = vmatpush2.msra.mxu0 %v571
  %669 = vmatprep.subr.mxu0 %v569
  %670 = vmatpush2.msra.mxu0 %v568
  %671 = vmatprep.subr.mxu0 %v566
  %672 = vmatpush2.msra.mxu0 %v565
  %673 = vmatprep.subr.mxu0 %v563
  %674 = vmatpush2.msra.mxu0 %v562
  %675 = vmatprep.subr.mxu0 %v560
  %676 = vmatpush2.msra.mxu0 %v559
  %677 = vmatprep.mubr.f32.mxu0 %v610
  %678 = vmatmul.mubr.f32.gmra.mxu0 %v609
  %v679 = vpop.f32.mrf.mxu0
  %v680 = vadd.f32 0.0, %v679
  %v681 = vpop.f32.mrf.mxu0
  %v682 = vadd.f32 0.0, %v681
  %683 = vdwg.mxu0
  %684 = vmatprep.subr.mxu0 0.0
  %685 = vmatpush1.msra.mxu0 %v558
  %686 = vmatprep.subr.mxu0 0.0
  %687 = vmatpush1.msra.mxu0 %v555
  %688 = vmatprep.subr.mxu0 0.0
  %689 = vmatpush1.msra.mxu0 %v552
  %690 = vmatprep.subr.mxu0 0.0
  %691 = vmatpush1.msra.mxu0 %v549
  %692 = vmatprep.subr.mxu0 0.0
  %693 = vmatpush1.msra.mxu0 %v546
  %694 = vmatprep.subr.mxu0 0.0
  %695 = vmatpush1.msra.mxu0 %v543
  %696 = vmatprep.subr.mxu0 0.0
  %697 = vmatpush1.msra.mxu0 %v540
  %698 = vmatprep.subr.mxu0 0.0
  %699 = vmatpush1.msra.mxu0 %v537
  %700 = vmatprep.subr.mxu0 0.0
  %701 = vmatpush1.msra.mxu0 %v534
  %702 = vmatprep.subr.mxu0 0.0
  %703 = vmatpush1.msra.mxu0 %v531
  %704 = vmatprep.subr.mxu0 0.0
  %705 = vmatpush1.msra.mxu0 %v528
  %706 = vmatprep.subr.mxu0 0.0
  %707 = vmatpush1.msra.mxu0 %v525
  %708 = vmatprep.subr.mxu0 0.0
  %709 = vmatpush1.msra.mxu0 %v522
  %710 = vmatprep.subr.mxu0 0.0
  %711 = vmatpush1.msra.mxu0 %v519
  %712 = vmatprep.subr.mxu0 0.0
  %713 = vmatpush1.msra.mxu0 %v516
  %714 = vmatprep.subr.mxu0 0.0
  %715 = vmatpush1.msra.mxu0 %v513
  %716 = vmatprep.subr.mxu0 0.0
  %717 = vmatpush2.msra.mxu0 %v606
  %718 = vmatprep.subr.mxu0 0.0
  %719 = vmatpush2.msra.mxu0 %v603
  %720 = vmatprep.subr.mxu0 0.0
  %721 = vmatpush2.msra.mxu0 %v600
  %722 = vmatprep.subr.mxu0 0.0
  %723 = vmatpush2.msra.mxu0 %v597
  %724 = vmatprep.subr.mxu0 0.0
  %725 = vmatpush2.msra.mxu0 %v594
  %726 = vmatprep.subr.mxu0 0.0
  %727 = vmatpush2.msra.mxu0 %v591
  %728 = vmatprep.subr.mxu0 0.0
  %729 = vmatpush2.msra.mxu0 %v588
  %730 = vmatprep.subr.mxu0 0.0
  %731 = vmatpush2.msra.mxu0 %v585
  %732 = vmatprep.subr.mxu0 0.0
  %733 = vmatpush2.msra.mxu0 %v582
  %734 = vmatprep.subr.mxu0 0.0
  %735 = vmatpush2.msra.mxu0 %v579
  %736 = vmatprep.subr.mxu0 0.0
  %737 = vmatpush2.msra.mxu0 %v576
  %738 = vmatprep.subr.mxu0 0.0
  %739 = vmatpush2.msra.mxu0 %v573
  %740 = vmatprep.subr.mxu0 0.0
  %741 = vmatpush2.msra.mxu0 %v570
  %742 = vmatprep.subr.mxu0 0.0
  %743 = vmatpush2.msra.mxu0 %v567
  %744 = vmatprep.subr.mxu0 0.0
  %745 = vmatpush2.msra.mxu0 %v564
  %746 = vmatprep.subr.mxu0 0.0
  %747 = vmatpush2.msra.mxu0 %v561
  %748 = vmatprep.mubr.f32.mxu0 %v610
  %749 = vmatmul.mubr.f32.gmra.mxu0 %v609
  %v750 = vpop.f32.mrf.mxu0
  %v751 = vadd.f32 0.0, %v750
  %v752 = vpop.f32.mrf.mxu0
  %753 = vdwg.mxu0
  %v754 = vadd.f32 %v434, %v680
  %v755 = vadd.f32 %v436, %v682
  %v756 = vadd.f32 %v505, %v751
  %s757 = scalar_lea.vmem %s0, 16
  %v758 = vld [vmem:[%s757] sm:$0x3f]
  %v759 = vld [vmem:[%s757 + $0x8] sm:$0x3f]
  %v760 = vld [vmem:[%s757] sm:$0x7e]
  %v761 = vld [vmem:[%s757 + $0x8] sm:$0x7e]
  %v764 = vrot.slane %v760, 1
  %v765 = vrot.slane %v761, 1
  %768 = vmatprep.subr.mxu0 %v170
  %769 = vmatpush1.msra.mxu0 %v169
  %770 = vmatprep.subr.mxu0 %v167
  %771 = vmatpush1.msra.mxu0 %v166
  %772 = vmatprep.subr.mxu0 %v164
  %773 = vmatpush1.msra.mxu0 %v163
  %774 = vmatprep.subr.mxu0 %v161
  %775 = vmatpush1.msra.mxu0 %v160
  %776 = vmatprep.subr.mxu0 %v158
  %777 = vmatpush1.msra.mxu0 %v157
  %778 = vmatprep.subr.mxu0 %v155
  %779 = vmatpush1.msra.mxu0 %v154
  %780 = vmatprep.subr.mxu0 %v152
  %781 = vmatpush1.msra.mxu0 %v151
  %782 = vmatprep.subr.mxu0 %v149
  %783 = vmatpush1.msra.mxu0 %v148
  %784 = vmatprep.subr.mxu0 %v146
  %785 = vmatpush1.msra.mxu0 %v145
  %786 = vmatprep.subr.mxu0 %v143
  %787 = vmatpush1.msra.mxu0 %v142
  %788 = vmatprep.subr.mxu0 %v140
  %789 = vmatpush1.msra.mxu0 %v139
  %790 = vmatprep.subr.mxu0 %v137
  %791 = vmatpush1.msra.mxu0 %v136
  %792 = vmatprep.subr.mxu0 %v134
  %793 = vmatpush1.msra.mxu0 %v133
  %794 = vmatprep.subr.mxu0 %v131
  %795 = vmatpush1.msra.mxu0 %v130
  %796 = vmatprep.subr.mxu0 %v128
  %797 = vmatpush1.msra.mxu0 %v127
  %798 = vmatprep.subr.mxu0 %v125
  %799 = vmatpush1.msra.mxu0 %v124
  %800 = vmatprep.subr.mxu0 %v218
  %801 = vmatpush2.msra.mxu0 %v217
  %802 = vmatprep.subr.mxu0 %v215
  %803 = vmatpush2.msra.mxu0 %v214
  %804 = vmatprep.subr.mxu0 %v212
  %805 = vmatpush2.msra.mxu0 %v211
  %806 = vmatprep.subr.mxu0 %v209
  %807 = vmatpush2.msra.mxu0 %v208
  %808 = vmatprep.subr.mxu0 %v206
  %809 = vmatpush2.msra.mxu0 %v205
  %810 = vmatprep.subr.mxu0 %v203
  %811 = vmatpush2.msra.mxu0 %v202
  %812 = vmatprep.subr.mxu0 %v200
  %813 = vmatpush2.msra.mxu0 %v199
  %814 = vmatprep.subr.mxu0 %v197
  %815 = vmatpush2.msra.mxu0 %v196
  %816 = vmatprep.subr.mxu0 %v194
  %817 = vmatpush2.msra.mxu0 %v193
  %818 = vmatprep.subr.mxu0 %v191
  %819 = vmatpush2.msra.mxu0 %v190
  %820 = vmatprep.subr.mxu0 %v188
  %821 = vmatpush2.msra.mxu0 %v187
  %822 = vmatprep.subr.mxu0 %v185
  %823 = vmatpush2.msra.mxu0 %v184
  %824 = vmatprep.subr.mxu0 %v182
  %825 = vmatpush2.msra.mxu0 %v181
  %826 = vmatprep.subr.mxu0 %v179
  %827 = vmatpush2.msra.mxu0 %v178
  %828 = vmatprep.subr.mxu0 %v176
  %829 = vmatpush2.msra.mxu0 %v175
  %830 = vmatprep.subr.mxu0 %v173
  %831 = vmatpush2.msra.mxu0 %v172
  %832 = vmatprep.mubr.f32.mxu0 %v765
  %833 = vmatmul.mubr.f32.gmra.mxu0 %v764
  %v834 = vpop.f32.mrf.mxu0
  %v835 = vadd.f32 0.0, %v834
  %v836 = vpop.f32.mrf.mxu0
  %v837 = vadd.f32 0.0, %v836
  %838 = vdwg.mxu0
  %839 = vmatprep.subr.mxu0 0.0
  %840 = vmatpush1.msra.mxu0 %v171
  %841 = vmatprep.subr.mxu0 0.0
  %842 = vmatpush1.msra.mxu0 %v168
  %843 = vmatprep.subr.mxu0 0.0
  %844 = vmatpush1.msra.mxu0 %v165
  %845 = vmatprep.subr.mxu0 0.0
  %846 = vmatpush1.msra.mxu0 %v162
  %847 = vmatprep.subr.mxu0 0.0
  %848 = vmatpush1.msra.mxu0 %v159
  %849 = vmatprep.subr.mxu0 0.0
  %850 = vmatpush1.msra.mxu0 %v156
  %851 = vmatprep.subr.mxu0 0.0
  %852 = vmatpush1.msra.mxu0 %v153
  %853 = vmatprep.subr.mxu0 0.0
  %854 = vmatpush1.msra.mxu0 %v150
  %855 = vmatprep.subr.mxu0 0.0
  %856 = vmatpush1.msra.mxu0 %v147
  %857 = vmatprep.subr.mxu0 0.0
  %858 = vmatpush1.msra.mxu0 %v144
  %859 = vmatprep.subr.mxu0 0.0
  %860 = vmatpush1.msra.mxu0 %v141
  %861 = vmatprep.subr.mxu0 0.0
  %862 = vmatpush1.msra.mxu0 %v138
  %863 = vmatprep.subr.mxu0 0.0
  %864 = vmatpush1.msra.mxu0 %v135
  %865 = vmatprep.subr.mxu0 0.0
  %866 = vmatpush1.msra.mxu0 %v132
  %867 = vmatprep.subr.mxu0 0.0
  %868 = vmatpush1.msra.mxu0 %v129
  %869 = vmatprep.subr.mxu0 0.0
  %870 = vmatpush1.msra.mxu0 %v126
  %871 = vmatprep.subr.mxu0 0.0
  %872 = vmatpush2.msra.mxu0 %v219
  %873 = vmatprep.subr.mxu0 0.0
  %874 = vmatpush2.msra.mxu0 %v216
  %875 = vmatprep.subr.mxu0 0.0
  %876 = vmatpush2.msra.mxu0 %v213
  %877 = vmatprep.subr.mxu0 0.0
  %878 = vmatpush2.msra.mxu0 %v210
  %879 = vmatprep.subr.mxu0 0.0
  %880 = vmatpush2.msra.mxu0 %v207
  %881 = vmatprep.subr.mxu0 0.0
  %882 = vmatpush2.msra.mxu0 %v204
  %883 = vmatprep.subr.mxu0 0.0
  %884 = vmatpush2.msra.mxu0 %v201
  %885 = vmatprep.subr.mxu0 0.0
  %886 = vmatpush2.msra.mxu0 %v198
  %887 = vmatprep.subr.mxu0 0.0
  %888 = vmatpush2.msra.mxu0 %v195
  %889 = vmatprep.subr.mxu0 0.0
  %890 = vmatpush2.msra.mxu0 %v192
  %891 = vmatprep.subr.mxu0 0.0
  %892 = vmatpush2.msra.mxu0 %v189
  %893 = vmatprep.subr.mxu0 0.0
  %894 = vmatpush2.msra.mxu0 %v186
  %895 = vmatprep.subr.mxu0 0.0
  %896 = vmatpush2.msra.mxu0 %v183
  %897 = vmatprep.subr.mxu0 0.0
  %898 = vmatpush2.msra.mxu0 %v180
  %899 = vmatprep.subr.mxu0 0.0
  %900 = vmatpush2.msra.mxu0 %v177
  %901 = vmatprep.subr.mxu0 0.0
  %902 = vmatpush2.msra.mxu0 %v174
  %903 = vmatprep.mubr.f32.mxu0 %v765
  %904 = vmatmul.mubr.f32.gmra.mxu0 %v764
  %v905 = vpop.f32.mrf.mxu0
  %v906 = vadd.f32 0.0, %v905
  %v907 = vpop.f32.mrf.mxu0
  %908 = vdwg.mxu0
  %909 = vmatprep.subr.mxu0 %v71
  %910 = vmatpush1.msra.mxu0 %v70
  %911 = vmatprep.subr.mxu0 %v68
  %912 = vmatpush1.msra.mxu0 %v67
  %913 = vmatprep.subr.mxu0 %v65
  %914 = vmatpush1.msra.mxu0 %v64
  %915 = vmatprep.subr.mxu0 %v62
  %916 = vmatpush1.msra.mxu0 %v61
  %917 = vmatprep.subr.mxu0 %v59
  %918 = vmatpush1.msra.mxu0 %v58
  %919 = vmatprep.subr.mxu0 %v56
  %920 = vmatpush1.msra.mxu0 %v55
  %921 = vmatprep.subr.mxu0 %v53
  %922 = vmatpush1.msra.mxu0 %v52
  %923 = vmatprep.subr.mxu0 %v50
  %924 = vmatpush1.msra.mxu0 %v49
  %925 = vmatprep.subr.mxu0 %v47
  %926 = vmatpush1.msra.mxu0 %v46
  %927 = vmatprep.subr.mxu0 %v44
  %928 = vmatpush1.msra.mxu0 %v43
  %929 = vmatprep.subr.mxu0 %v41
  %930 = vmatpush1.msra.mxu0 %v40
  %931 = vmatprep.subr.mxu0 %v38
  %932 = vmatpush1.msra.mxu0 %v37
  %933 = vmatprep.subr.mxu0 %v35
  %934 = vmatpush1.msra.mxu0 %v34
  %935 = vmatprep.subr.mxu0 %v32
  %936 = vmatpush1.msra.mxu0 %v31
  %937 = vmatprep.subr.mxu0 %v29
  %938 = vmatpush1.msra.mxu0 %v28
  %939 = vmatprep.subr.mxu0 %v26
  %940 = vmatpush1.msra.mxu0 %v25
  %941 = vmatprep.subr.mxu0 %v119
  %942 = vmatpush2.msra.mxu0 %v118
  %943 = vmatprep.subr.mxu0 %v116
  %944 = vmatpush2.msra.mxu0 %v115
  %945 = vmatprep.subr.mxu0 %v113
  %946 = vmatpush2.msra.mxu0 %v112
  %947 = vmatprep.subr.mxu0 %v110
  %948 = vmatpush2.msra.mxu0 %v109
  %949 = vmatprep.subr.mxu0 %v107
  %950 = vmatpush2.msra.mxu0 %v106
  %951 = vmatprep.subr.mxu0 %v104
  %952 = vmatpush2.msra.mxu0 %v103
  %953 = vmatprep.subr.mxu0 %v101
  %954 = vmatpush2.msra.mxu0 %v100
  %955 = vmatprep.subr.mxu0 %v98
  %956 = vmatpush2.msra.mxu0 %v97
  %957 = vmatprep.subr.mxu0 %v95
  %958 = vmatpush2.msra.mxu0 %v94
  %959 = vmatprep.subr.mxu0 %v92
  %960 = vmatpush2.msra.mxu0 %v91
  %961 = vmatprep.subr.mxu0 %v89
  %962 = vmatpush2.msra.mxu0 %v88
  %963 = vmatprep.subr.mxu0 %v86
  %964 = vmatpush2.msra.mxu0 %v85
  %965 = vmatprep.subr.mxu0 %v83
  %966 = vmatpush2.msra.mxu0 %v82
  %967 = vmatprep.subr.mxu0 %v80
  %968 = vmatpush2.msra.mxu0 %v79
  %969 = vmatprep.subr.mxu0 %v77
  %970 = vmatpush2.msra.mxu0 %v76
  %971 = vmatprep.subr.mxu0 %v74
  %972 = vmatpush2.msra.mxu0 %v73
  %973 = vmatprep.mubr.f32.mxu0 %v759
  %974 = vmatmul.mubr.f32.gmra.mxu0 %v758
  %v975 = vpop.f32.mrf.mxu0
  %v976 = vadd.f32 %v835, %v975
  %v977 = vpop.f32.mrf.mxu0
  %v978 = vadd.f32 %v837, %v977
  %979 = vdwg.mxu0
  %980 = vmatprep.subr.mxu0 0.0
  %981 = vmatpush1.msra.mxu0 %v72
  %982 = vmatprep.subr.mxu0 0.0
  %983 = vmatpush1.msra.mxu0 %v69
  %984 = vmatprep.subr.mxu0 0.0
  %985 = vmatpush1.msra.mxu0 %v66
  %986 = vmatprep.subr.mxu0 0.0
  %987 = vmatpush1.msra.mxu0 %v63
  %988 = vmatprep.subr.mxu0 0.0
  %989 = vmatpush1.msra.mxu0 %v60
  %990 = vmatprep.subr.mxu0 0.0
  %991 = vmatpush1.msra.mxu0 %v57
  %992 = vmatprep.subr.mxu0 0.0
  %993 = vmatpush1.msra.mxu0 %v54
  %994 = vmatprep.subr.mxu0 0.0
  %995 = vmatpush1.msra.mxu0 %v51
  %996 = vmatprep.subr.mxu0 0.0
  %997 = vmatpush1.msra.mxu0 %v48
  %998 = vmatprep.subr.mxu0 0.0
  %999 = vmatpush1.msra.mxu0 %v45
  %1000 = vmatprep.subr.mxu0 0.0
  %1001 = vmatpush1.msra.mxu0 %v42
  %1002 = vmatprep.subr.mxu0 0.0
  %1003 = vmatpush1.msra.mxu0 %v39
  %1004 = vmatprep.subr.mxu0 0.0
  %1005 = vmatpush1.msra.mxu0 %v36
  %1006 = vmatprep.subr.mxu0 0.0
  %1007 = vmatpush1.msra.mxu0 %v33
  %1008 = vmatprep.subr.mxu0 0.0
  %1009 = vmatpush1.msra.mxu0 %v30
  %1010 = vmatprep.subr.mxu0 0.0
  %1011 = vmatpush1.msra.mxu0 %v27
  %1012 = vmatprep.subr.mxu0 0.0
  %1013 = vmatpush2.msra.mxu0 %v120
  %1014 = vmatprep.subr.mxu0 0.0
  %1015 = vmatpush2.msra.mxu0 %v117
  %1016 = vmatprep.subr.mxu0 0.0
  %1017 = vmatpush2.msra.mxu0 %v114
  %1018 = vmatprep.subr.mxu0 0.0
  %1019 = vmatpush2.msra.mxu0 %v111
  %1020 = vmatprep.subr.mxu0 0.0
  %1021 = vmatpush2.msra.mxu0 %v108
  %1022 = vmatprep.subr.mxu0 0.0
  %1023 = vmatpush2.msra.mxu0 %v105
  %1024 = vmatprep.subr.mxu0 0.0
  %1025 = vmatpush2.msra.mxu0 %v102
  %1026 = vmatprep.subr.mxu0 0.0
  %1027 = vmatpush2.msra.mxu0 %v99
  %1028 = vmatprep.subr.mxu0 0.0
  %1029 = vmatpush2.msra.mxu0 %v96
  %1030 = vmatprep.subr.mxu0 0.0
  %1031 = vmatpush2.msra.mxu0 %v93
  %1032 = vmatprep.subr.mxu0 0.0
  %1033 = vmatpush2.msra.mxu0 %v90
  %1034 = vmatprep.subr.mxu0 0.0
  %1035 = vmatpush2.msra.mxu0 %v87
  %1036 = vmatprep.subr.mxu0 0.0
  %1037 = vmatpush2.msra.mxu0 %v84
  %1038 = vmatprep.subr.mxu0 0.0
  %1039 = vmatpush2.msra.mxu0 %v81
  %1040 = vmatprep.subr.mxu0 0.0
  %1041 = vmatpush2.msra.mxu0 %v78
  %1042 = vmatprep.subr.mxu0 0.0
  %1043 = vmatpush2.msra.mxu0 %v75
  %1044 = vmatprep.mubr.f32.mxu0 %v759
  %1045 = vmatmul.mubr.f32.gmra.mxu0 %v758
  %v1046 = vpop.f32.mrf.mxu0
  %v1047 = vadd.f32 %v906, %v1046
  %v1048 = vpop.f32.mrf.mxu0
  %1049 = vdwg.mxu0
  %v1050 = vld [vmem:[%s757] sm:$0xfc]
  %v1051 = vld [vmem:[%s757 + $0x8] sm:$0xfc]
  %v1054 = vrot.slane %v1050, 2
  %v1055 = vrot.slane %v1051, 2
  %1058 = vmatprep.subr.mxu0 %v557
  %1059 = vmatpush1.msra.mxu0 %v556
  %1060 = vmatprep.subr.mxu0 %v554
  %1061 = vmatpush1.msra.mxu0 %v553
  %1062 = vmatprep.subr.mxu0 %v551
  %1063 = vmatpush1.msra.mxu0 %v550
  %1064 = vmatprep.subr.mxu0 %v548
  %1065 = vmatpush1.msra.mxu0 %v547
  %1066 = vmatprep.subr.mxu0 %v545
  %1067 = vmatpush1.msra.mxu0 %v544
  %1068 = vmatprep.subr.mxu0 %v542
  %1069 = vmatpush1.msra.mxu0 %v541
  %1070 = vmatprep.subr.mxu0 %v539
  %1071 = vmatpush1.msra.mxu0 %v538
  %1072 = vmatprep.subr.mxu0 %v536
  %1073 = vmatpush1.msra.mxu0 %v535
  %1074 = vmatprep.subr.mxu0 %v533
  %1075 = vmatpush1.msra.mxu0 %v532
  %1076 = vmatprep.subr.mxu0 %v530
  %1077 = vmatpush1.msra.mxu0 %v529
  %1078 = vmatprep.subr.mxu0 %v527
  %1079 = vmatpush1.msra.mxu0 %v526
  %1080 = vmatprep.subr.mxu0 %v524
  %1081 = vmatpush1.msra.mxu0 %v523
  %1082 = vmatprep.subr.mxu0 %v521
  %1083 = vmatpush1.msra.mxu0 %v520
  %1084 = vmatprep.subr.mxu0 %v518
  %1085 = vmatpush1.msra.mxu0 %v517
  %1086 = vmatprep.subr.mxu0 %v515
  %1087 = vmatpush1.msra.mxu0 %v514
  %1088 = vmatprep.subr.mxu0 %v512
  %1089 = vmatpush1.msra.mxu0 %v511
  %1090 = vmatprep.subr.mxu0 %v605
  %1091 = vmatpush2.msra.mxu0 %v604
  %1092 = vmatprep.subr.mxu0 %v602
  %1093 = vmatpush2.msra.mxu0 %v601
  %1094 = vmatprep.subr.mxu0 %v599
  %1095 = vmatpush2.msra.mxu0 %v598
  %1096 = vmatprep.subr.mxu0 %v596
  %1097 = vmatpush2.msra.mxu0 %v595
  %1098 = vmatprep.subr.mxu0 %v593
  %1099 = vmatpush2.msra.mxu0 %v592
  %1100 = vmatprep.subr.mxu0 %v590
  %1101 = vmatpush2.msra.mxu0 %v589
  %1102 = vmatprep.subr.mxu0 %v587
  %1103 = vmatpush2.msra.mxu0 %v586
  %1104 = vmatprep.subr.mxu0 %v584
  %1105 = vmatpush2.msra.mxu0 %v583
  %1106 = vmatprep.subr.mxu0 %v581
  %1107 = vmatpush2.msra.mxu0 %v580
  %1108 = vmatprep.subr.mxu0 %v578
  %1109 = vmatpush2.msra.mxu0 %v577
  %1110 = vmatprep.subr.mxu0 %v575
  %1111 = vmatpush2.msra.mxu0 %v574
  %1112 = vmatprep.subr.mxu0 %v572
  %1113 = vmatpush2.msra.mxu0 %v571
  %1114 = vmatprep.subr.mxu0 %v569
  %1115 = vmatpush2.msra.mxu0 %v568
  %1116 = vmatprep.subr.mxu0 %v566
  %1117 = vmatpush2.msra.mxu0 %v565
  %1118 = vmatprep.subr.mxu0 %v563
  %1119 = vmatpush2.msra.mxu0 %v562
  %1120 = vmatprep.subr.mxu0 %v560
  %1121 = vmatpush2.msra.mxu0 %v559
  %1122 = vmatprep.mubr.f32.mxu0 %v1055
  %1123 = vmatmul.mubr.f32.gmra.mxu0 %v1054
  %v1124 = vpop.f32.mrf.mxu0
  %v1125 = vadd.f32 0.0, %v1124
  %v1126 = vpop.f32.mrf.mxu0
  %v1127 = vadd.f32 0.0, %v1126
  %1128 = vdwg.mxu0
  %1129 = vmatprep.subr.mxu0 0.0
  %1130 = vmatpush1.msra.mxu0 %v558
  %1131 = vmatprep.subr.mxu0 0.0
  %1132 = vmatpush1.msra.mxu0 %v555
  %1133 = vmatprep.subr.mxu0 0.0
  %1134 = vmatpush1.msra.mxu0 %v552
  %1135 = vmatprep.subr.mxu0 0.0
  %1136 = vmatpush1.msra.mxu0 %v549
  %1137 = vmatprep.subr.mxu0 0.0
  %1138 = vmatpush1.msra.mxu0 %v546
  %1139 = vmatprep.subr.mxu0 0.0
  %1140 = vmatpush1.msra.mxu0 %v543
  %1141 = vmatprep.subr.mxu0 0.0
  %1142 = vmatpush1.msra.mxu0 %v540
  %1143 = vmatprep.subr.mxu0 0.0
  %1144 = vmatpush1.msra.mxu0 %v537
  %1145 = vmatprep.subr.mxu0 0.0
  %1146 = vmatpush1.msra.mxu0 %v534
  %1147 = vmatprep.subr.mxu0 0.0
  %1148 = vmatpush1.msra.mxu0 %v531
  %1149 = vmatprep.subr.mxu0 0.0
  %1150 = vmatpush1.msra.mxu0 %v528
  %1151 = vmatprep.subr.mxu0 0.0
  %1152 = vmatpush1.msra.mxu0 %v525
  %1153 = vmatprep.subr.mxu0 0.0
  %1154 = vmatpush1.msra.mxu0 %v522
  %1155 = vmatprep.subr.mxu0 0.0
  %1156 = vmatpush1.msra.mxu0 %v519
  %1157 = vmatprep.subr.mxu0 0.0
  %1158 = vmatpush1.msra.mxu0 %v516
  %1159 = vmatprep.subr.mxu0 0.0
  %1160 = vmatpush1.msra.mxu0 %v513
  %1161 = vmatprep.subr.mxu0 0.0
  %1162 = vmatpush2.msra.mxu0 %v606
  %1163 = vmatprep.subr.mxu0 0.0
  %1164 = vmatpush2.msra.mxu0 %v603
  %1165 = vmatprep.subr.mxu0 0.0
  %1166 = vmatpush2.msra.mxu0 %v600
  %1167 = vmatprep.subr.mxu0 0.0
  %1168 = vmatpush2.msra.mxu0 %v597
  %1169 = vmatprep.subr.mxu0 0.0
  %1170 = vmatpush2.msra.mxu0 %v594
  %1171 = vmatprep.subr.mxu0 0.0
  %1172 = vmatpush2.msra.mxu0 %v591
  %1173 = vmatprep.subr.mxu0 0.0
  %1174 = vmatpush2.msra.mxu0 %v588
  %1175 = vmatprep.subr.mxu0 0.0
  %1176 = vmatpush2.msra.mxu0 %v585
  %1177 = vmatprep.subr.mxu0 0.0
  %1178 = vmatpush2.msra.mxu0 %v582
  %1179 = vmatprep.subr.mxu0 0.0
  %1180 = vmatpush2.msra.mxu0 %v579
  %1181 = vmatprep.subr.mxu0 0.0
  %1182 = vmatpush2.msra.mxu0 %v576
  %1183 = vmatprep.subr.mxu0 0.0
  %1184 = vmatpush2.msra.mxu0 %v573
  %1185 = vmatprep.subr.mxu0 0.0
  %1186 = vmatpush2.msra.mxu0 %v570
  %1187 = vmatprep.subr.mxu0 0.0
  %1188 = vmatpush2.msra.mxu0 %v567
  %1189 = vmatprep.subr.mxu0 0.0
  %1190 = vmatpush2.msra.mxu0 %v564
  %1191 = vmatprep.subr.mxu0 0.0
  %1192 = vmatpush2.msra.mxu0 %v561
  %1193 = vmatprep.mubr.f32.mxu0 %v1055
  %1194 = vmatmul.mubr.f32.gmra.mxu0 %v1054
  %v1195 = vpop.f32.mrf.mxu0
  %v1196 = vadd.f32 0.0, %v1195
  %v1197 = vpop.f32.mrf.mxu0
  %1198 = vdwg.mxu0
  %v1199 = vadd.f32 %v976, %v1125
  %v1200 = vadd.f32 %v978, %v1127
  %v1201 = vadd.f32 %v1047, %v1196
  %v1202 = vld [vmem:[%s2] sm:$0xff]
  %v1203 = vld [vmem:[%s2 + $0x8] sm:$0xff]
  %v1204 = vld [vmem:[%s2 + $0x10] sm:$0xff]
  %v1205 = vld [vmem:[%s2 + $0x18] sm:$0xff]
  %v1206 = vld [vmem:[%s2 + $0x20] sm:$0xff]
  %v1207 = vld [vmem:[%s2 + $0x28] sm:$0xff]
  %v1208 = vld [vmem:[%s2 + $0x30] sm:$0xff]
  %v1209 = vld [vmem:[%s2 + $0x38] sm:$0xff]
  %v1210 = vld [vmem:[%s2 + $0x40] sm:$0xff]
  %v1211 = vld [vmem:[%s2 + $0x48] sm:$0xff]
  %v1212 = vld [vmem:[%s2 + $0x50] sm:$0xff]
  %v1213 = vld [vmem:[%s2 + $0x58] sm:$0xff]
  %v1214 = vld [vmem:[%s2 + $0x60] sm:$0xff]
  %v1215 = vld [vmem:[%s2 + $0x68] sm:$0xff]
  %v1216 = vld [vmem:[%s2 + $0x70] sm:$0xff]
  %v1217 = vld [vmem:[%s2 + $0x78] sm:$0xff]
  %v1218 = vld [vmem:[%s2 + $0x80] sm:$0xff]
  %v1219 = vld [vmem:[%s2 + $0x88] sm:$0xff]
  %v1220 = vld [vmem:[%s2 + $0x90] sm:$0xff]
  %v1221 = vld [vmem:[%s2 + $0x98] sm:$0xff]
  %v1222 = vld [vmem:[%s2 + $0xa0] sm:$0xff]
  %v1223 = vld [vmem:[%s2 + $0xa8] sm:$0xff]
  %v1224 = vld [vmem:[%s2 + $0xb0] sm:$0xff]
  %v1225 = vld [vmem:[%s2 + $0xb8] sm:$0xff]
  %v1226 = vld [vmem:[%s2 + $0xc0] sm:$0xff]
  %v1227 = vld [vmem:[%s2 + $0xc8] sm:$0xff]
  %v1228 = vld [vmem:[%s2 + $0xd0] sm:$0xff]
  %v1229 = vld [vmem:[%s2 + $0xd8] sm:$0xff]
  %v1230 = vld [vmem:[%s2 + $0xe0] sm:$0xff]
  %v1231 = vld [vmem:[%s2 + $0xe8] sm:$0xff]
  %v1232 = vld [vmem:[%s2 + $0xf0] sm:$0xff]
  %v1233 = vld [vmem:[%s2 + $0xf8] sm:$0xff]
  %v1234 = vld [vmem:[%s2 + $0x100] sm:$0xff]
  %v1235 = vld [vmem:[%s2 + $0x108] sm:$0xff]
  %v1236 = vld [vmem:[%s2 + $0x110] sm:$0xff]
  %v1237 = vld [vmem:[%s2 + $0x118] sm:$0xff]
  %v1238 = vld [vmem:[%s3] sm:$0xff]
  %v1239 = vld [vmem:[%s3 + $0x8] sm:$0xff]
  %v1240 = vld [vmem:[%s3 + $0x10] sm:$0xff]
  %vm1241 = vcmask 1045504
  %v1242 = vsel %vm1241, %v754, 0.0
  %v1243 = vrot.slane %v1242, 4
  %v1244 = vadd.f32 %v1242, %v1243
  %v1245 = vrot.slane %v1244, 2
  %v1246 = vadd.f32 %v1244, %v1245
  %v1247 = vrot.slane %v1246, 1
  %v1248 = vadd.f32 %v1246, %v1247
  %v1249 = vsel %vm1241, %v755, 0.0
  %v1250 = vrot.slane %v1249, 4
  %v1251 = vadd.f32 %v1249, %v1250
  %v1252 = vrot.slane %v1251, 2
  %v1253 = vadd.f32 %v1251, %v1252
  %v1254 = vrot.slane %v1253, 1
  %v1255 = vadd.f32 %v1253, %v1254
  %vm1256 = vcmask 259072
  %v1257 = vsel %vm1256, %v756, 0.0
  %v1258 = vrot.slane %v1257, 4
  %v1259 = vadd.f32 %v1257, %v1258
  %v1260 = vrot.slane %v1259, 2
  %v1261 = vadd.f32 %v1259, %v1260
  %v1262 = vrot.slane %v1261, 1
  %v1263 = vadd.f32 %v1261, %v1262
  %v1264 = vsel %vm1241, %v1199, 0.0
  %v1265 = vrot.slane %v1264, 4
  %v1266 = vadd.f32 %v1264, %v1265
  %v1267 = vrot.slane %v1266, 2
  %v1268 = vadd.f32 %v1266, %v1267
  %v1269 = vrot.slane %v1268, 1
  %v1270 = vadd.f32 %v1268, %v1269
  %v1271 = vsel %vm1241, %v1200, 0.0
  %v1272 = vrot.slane %v1271, 4
  %v1273 = vadd.f32 %v1271, %v1272
  %v1274 = vrot.slane %v1273, 2
  %v1275 = vadd.f32 %v1273, %v1274
  %v1276 = vrot.slane %v1275, 1
  %v1277 = vadd.f32 %v1275, %v1276
  %v1278 = vsel %vm1256, %v1201, 0.0
  %v1279 = vrot.slane %v1278, 4
  %v1280 = vadd.f32 %v1278, %v1279
  %v1281 = vrot.slane %v1280, 2
  %v1282 = vadd.f32 %v1280, %v1281
  %v1283 = vrot.slane %v1282, 1
  %v1284 = vadd.f32 %v1282, %v1283
  %v1285 = vadd.f32 %v1248, %v1270
  %v1286 = vadd.f32 %v1255, %v1277
  %v1287 = vadd.f32 %v1263, %v1284
  %vm1288 = vcmask 261120
  %v1290 = vsel %vm1288, %v1287, 0
  %1292 = vmatprep.subr.mxu0 0.0
  %1293 = vmatpush1.msra.mxu0 %v1217
  %1294 = vmatprep.subr.mxu0 0.0
  %1295 = vmatpush1.msra.mxu0 %v1216
  %1296 = vmatprep.subr.mxu0 0.0
  %1297 = vmatpush1.msra.mxu0 %v1215
  %1298 = vmatprep.subr.mxu0 0.0
  %1299 = vmatpush1.msra.mxu0 %v1214
  %1300 = vmatprep.subr.mxu0 0.0
  %1301 = vmatpush1.msra.mxu0 %v1213
  %1302 = vmatprep.subr.mxu0 0.0
  %1303 = vmatpush1.msra.mxu0 %v1212
  %1304 = vmatprep.subr.mxu0 0.0
  %1305 = vmatpush1.msra.mxu0 %v1211
  %1306 = vmatprep.subr.mxu0 0.0
  %1307 = vmatpush1.msra.mxu0 %v1210
  %1308 = vmatprep.subr.mxu0 0.0
  %1309 = vmatpush1.msra.mxu0 %v1209
  %1310 = vmatprep.subr.mxu0 0.0
  %1311 = vmatpush1.msra.mxu0 %v1208
  %1312 = vmatprep.subr.mxu0 0.0
  %1313 = vmatpush1.msra.mxu0 %v1207
  %1314 = vmatprep.subr.mxu0 0.0
  %1315 = vmatpush1.msra.mxu0 %v1206
  %1316 = vmatprep.subr.mxu0 0.0
  %1317 = vmatpush1.msra.mxu0 %v1205
  %1318 = vmatprep.subr.mxu0 0.0
  %1319 = vmatpush1.msra.mxu0 %v1204
  %1320 = vmatprep.subr.mxu0 0.0
  %1321 = vmatpush1.msra.mxu0 %v1203
  %1322 = vmatprep.subr.mxu0 0.0
  %1323 = vmatpush1.msra.mxu0 %v1202
  %1324 = vmatprep.subr.mxu0 0.0
  %1325 = vmatpush2.msra.mxu0 %v1233
  %1326 = vmatprep.subr.mxu0 0.0
  %1327 = vmatpush2.msra.mxu0 %v1232
  %1328 = vmatprep.subr.mxu0 0.0
  %1329 = vmatpush2.msra.mxu0 %v1231
  %1330 = vmatprep.subr.mxu0 0.0
  %1331 = vmatpush2.msra.mxu0 %v1230
  %1332 = vmatprep.subr.mxu0 0.0
  %1333 = vmatpush2.msra.mxu0 %v1229
  %1334 = vmatprep.subr.mxu0 0.0
  %1335 = vmatpush2.msra.mxu0 %v1228
  %1336 = vmatprep.subr.mxu0 0.0
  %1337 = vmatpush2.msra.mxu0 %v1227
  %1338 = vmatprep.subr.mxu0 0.0
  %1339 = vmatpush2.msra.mxu0 %v1226
  %1340 = vmatprep.subr.mxu0 0.0
  %1341 = vmatpush2.msra.mxu0 %v1225
  %1342 = vmatprep.subr.mxu0 0.0
  %1343 = vmatpush2.msra.mxu0 %v1224
  %1344 = vmatprep.subr.mxu0 0.0
  %1345 = vmatpush2.msra.mxu0 %v1223
  %1346 = vmatprep.subr.mxu0 0.0
  %1347 = vmatpush2.msra.mxu0 %v1222
  %1348 = vmatprep.subr.mxu0 0.0
  %1349 = vmatpush2.msra.mxu0 %v1221
  %1350 = vmatprep.subr.mxu0 0.0
  %1351 = vmatpush2.msra.mxu0 %v1220
  %1352 = vmatprep.subr.mxu0 0.0
  %1353 = vmatpush2.msra.mxu0 %v1219
  %1354 = vmatprep.subr.mxu0 0.0
  %1355 = vmatpush2.msra.mxu0 %v1218
  %1356 = vmatprep.mubr.f32.mxu0 %v1286
  %1357 = vmatmul.mubr.f32.gmra.mxu0 %v1285
  %v1358 = vpop.f32.mrf.mxu0
  %v1359 = vadd.f32 0.0, %v1358
  %v1360 = vpop.f32.mrf.mxu0
  %1361 = vdwg.mxu0
  %1362 = vmatprep.subr.mxu0 0.0
  %1363 = vmatpush1.msra.mxu0 0.0
  %1364 = vmatprep.subr.mxu0 0.0
  %1365 = vmatpush1.msra.mxu0 0.0
  %1366 = vmatprep.subr.mxu0 0.0
  %1367 = vmatpush1.msra.mxu0 0.0
  %1368 = vmatprep.subr.mxu0 0.0
  %1369 = vmatpush1.msra.mxu0 0.0
  %1370 = vmatprep.subr.mxu0 0.0
  %1371 = vmatpush1.msra.mxu0 0.0
  %1372 = vmatprep.subr.mxu0 0.0
  %1373 = vmatpush1.msra.mxu0 0.0
  %1374 = vmatprep.subr.mxu0 0.0
  %1375 = vmatpush1.msra.mxu0 0.0
  %1376 = vmatprep.subr.mxu0 0.0
  %1377 = vmatpush1.msra.mxu0 0.0
  %1378 = vmatprep.subr.mxu0 0.0
  %1379 = vmatpush1.msra.mxu0 0.0
  %1380 = vmatprep.subr.mxu0 0.0
  %1381 = vmatpush1.msra.mxu0 0.0
  %1382 = vmatprep.subr.mxu0 0.0
  %1383 = vmatpush1.msra.mxu0 0.0
  %1384 = vmatprep.subr.mxu0 0.0
  %1385 = vmatpush1.msra.mxu0 0.0
  %1386 = vmatprep.subr.mxu0 0.0
  %1387 = vmatpush1.msra.mxu0 %v1237
  %1388 = vmatprep.subr.mxu0 0.0
  %1389 = vmatpush1.msra.mxu0 %v1236
  %1390 = vmatprep.subr.mxu0 0.0
  %1391 = vmatpush1.msra.mxu0 %v1235
  %1392 = vmatprep.subr.mxu0 0.0
  %1393 = vmatpush1.msra.mxu0 %v1234
  %1394 = vmatprep.subr.mxu0 0.0
  %1395 = vmatpush2.msra.mxu0 0.0
  %1396 = vmatprep.subr.mxu0 0.0
  %1397 = vmatpush2.msra.mxu0 0.0
  %1398 = vmatprep.subr.mxu0 0.0
  %1399 = vmatpush2.msra.mxu0 0.0
  %1400 = vmatprep.subr.mxu0 0.0
  %1401 = vmatpush2.msra.mxu0 0.0
  %1402 = vmatprep.subr.mxu0 0.0
  %1403 = vmatpush2.msra.mxu0 0.0
  %1404 = vmatprep.subr.mxu0 0.0
  %1405 = vmatpush2.msra.mxu0 0.0
  %1406 = vmatprep.subr.mxu0 0.0
  %1407 = vmatpush2.msra.mxu0 0.0
  %1408 = vmatprep.subr.mxu0 0.0
  %1409 = vmatpush2.msra.mxu0 0.0
  %1410 = vmatprep.subr.mxu0 0.0
  %1411 = vmatpush2.msra.mxu0 0.0
  %1412 = vmatprep.subr.mxu0 0.0
  %1413 = vmatpush2.msra.mxu0 0.0
  %1414 = vmatprep.subr.mxu0 0.0
  %1415 = vmatpush2.msra.mxu0 0.0
  %1416 = vmatprep.subr.mxu0 0.0
  %1417 = vmatpush2.msra.mxu0 0.0
  %1418 = vmatprep.subr.mxu0 0.0
  %1419 = vmatpush2.msra.mxu0 0.0
  %1420 = vmatprep.subr.mxu0 0.0
  %1421 = vmatpush2.msra.mxu0 0.0
  %1422 = vmatprep.subr.mxu0 0.0
  %1423 = vmatpush2.msra.mxu0 0.0
  %1424 = vmatprep.subr.mxu0 0.0
  %1425 = vmatpush2.msra.mxu0 0.0
  %1426 = vmatprep.mubr.f32.mxu0 0.0
  %1427 = vmatmul.mubr.f32.gmra.mxu0 %v1290
  %v1428 = vpop.f32.mrf.mxu0
  %v1429 = vadd.f32 %v1359, %v1428
  %v1430 = vpop.f32.mrf.mxu0
  %1431 = vdwg.mxu0
  %v1432 = vmul.f32 %v1429, 0.0023148148
  %vm1433 = vcmask 64512
  %v1435 = vsel %vm1433, %v1432, 0
  %1437 = vmatprep.subr.mxu0 0.0
  %1438 = vmatpush1.msra.mxu0 0.0
  %1439 = vmatprep.subr.mxu0 0.0
  %1440 = vmatpush1.msra.mxu0 0.0
  %1441 = vmatprep.subr.mxu0 0.0
  %1442 = vmatpush1.msra.mxu0 0.0
  %1443 = vmatprep.subr.mxu0 0.0
  %1444 = vmatpush1.msra.mxu0 0.0
  %1445 = vmatprep.subr.mxu0 0.0
  %1446 = vmatpush1.msra.mxu0 0.0
  %1447 = vmatprep.subr.mxu0 0.0
  %1448 = vmatpush1.msra.mxu0 0.0
  %1449 = vmatprep.subr.mxu0 0.0
  %1450 = vmatpush1.msra.mxu0 0.0
  %1451 = vmatprep.subr.mxu0 0.0
  %1452 = vmatpush1.msra.mxu0 0.0
  %1453 = vmatprep.subr.mxu0 0.0
  %1454 = vmatpush1.msra.mxu0 0.0
  %1455 = vmatprep.subr.mxu0 0.0
  %1456 = vmatpush1.msra.mxu0 0.0
  %1457 = vmatprep.subr.mxu0 0.0
  %1458 = vmatpush1.msra.mxu0 0.0
  %1459 = vmatprep.subr.mxu0 0.0
  %1460 = vmatpush1.msra.mxu0 0.0
  %1461 = vmatprep.subr.mxu0 0.0
  %1462 = vmatpush1.msra.mxu0 0.0
  %1463 = vmatprep.subr.mxu0 0.0
  %1464 = vmatpush1.msra.mxu0 0.0
  %1465 = vmatprep.subr.mxu0 0.0
  %1466 = vmatpush1.msra.mxu0 0.0
  %1467 = vmatprep.subr.mxu0 %v1239
  %1468 = vmatpush1.msra.mxu0 %v1238
  %1469 = vmatprep.subr.mxu0 0.0
  %1470 = vmatpush2.msra.mxu0 0.0
  %1471 = vmatprep.subr.mxu0 0.0
  %1472 = vmatpush2.msra.mxu0 0.0
  %1473 = vmatprep.subr.mxu0 0.0
  %1474 = vmatpush2.msra.mxu0 0.0
  %1475 = vmatprep.subr.mxu0 0.0
  %1476 = vmatpush2.msra.mxu0 0.0
  %1477 = vmatprep.subr.mxu0 0.0
  %1478 = vmatpush2.msra.mxu0 0.0
  %1479 = vmatprep.subr.mxu0 0.0
  %1480 = vmatpush2.msra.mxu0 0.0
  %1481 = vmatprep.subr.mxu0 0.0
  %1482 = vmatpush2.msra.mxu0 0.0
  %1483 = vmatprep.subr.mxu0 0.0
  %1484 = vmatpush2.msra.mxu0 0.0
  %1485 = vmatprep.subr.mxu0 0.0
  %1486 = vmatpush2.msra.mxu0 0.0
  %1487 = vmatprep.subr.mxu0 0.0
  %1488 = vmatpush2.msra.mxu0 0.0
  %1489 = vmatprep.subr.mxu0 0.0
  %1490 = vmatpush2.msra.mxu0 0.0
  %1491 = vmatprep.subr.mxu0 0.0
  %1492 = vmatpush2.msra.mxu0 0.0
  %1493 = vmatprep.subr.mxu0 0.0
  %1494 = vmatpush2.msra.mxu0 0.0
  %1495 = vmatprep.subr.mxu0 0.0
  %1496 = vmatpush2.msra.mxu0 0.0
  %1497 = vmatprep.subr.mxu0 0.0
  %1498 = vmatpush2.msra.mxu0 0.0
  %1499 = vmatprep.subr.mxu0 0.0
  %1500 = vmatpush2.msra.mxu0 0.0
  %1501 = vmatprep.mubr.f32.mxu0 0.0
  %1502 = vmatmul.mubr.f32.gmra.mxu0 %v1435
  %v1503 = vpop.f32.mrf.mxu0
  %v1504 = vadd.f32 0.0, %v1503
  %v1505 = vpop.f32.mrf.mxu0
  %v1506 = vadd.f32 0.0, %v1505
  %1507 = vdwg.mxu0
  %1508 = vmatprep.subr.mxu0 0.0
  %1509 = vmatpush1.msra.mxu0 0.0
  %1510 = vmatprep.subr.mxu0 0.0
  %1511 = vmatpush1.msra.mxu0 0.0
  %1512 = vmatprep.subr.mxu0 0.0
  %1513 = vmatpush1.msra.mxu0 0.0
  %1514 = vmatprep.subr.mxu0 0.0
  %1515 = vmatpush1.msra.mxu0 0.0
  %1516 = vmatprep.subr.mxu0 0.0
  %1517 = vmatpush1.msra.mxu0 0.0
  %1518 = vmatprep.subr.mxu0 0.0
  %1519 = vmatpush1.msra.mxu0 0.0
  %1520 = vmatprep.subr.mxu0 0.0
  %1521 = vmatpush1.msra.mxu0 0.0
  %1522 = vmatprep.subr.mxu0 0.0
  %1523 = vmatpush1.msra.mxu0 0.0
  %1524 = vmatprep.subr.mxu0 0.0
  %1525 = vmatpush1.msra.mxu0 0.0
  %1526 = vmatprep.subr.mxu0 0.0
  %1527 = vmatpush1.msra.mxu0 0.0
  %1528 = vmatprep.subr.mxu0 0.0
  %1529 = vmatpush1.msra.mxu0 0.0
  %1530 = vmatprep.subr.mxu0 0.0
  %1531 = vmatpush1.msra.mxu0 0.0
  %1532 = vmatprep.subr.mxu0 0.0
  %1533 = vmatpush1.msra.mxu0 0.0
  %1534 = vmatprep.subr.mxu0 0.0
  %1535 = vmatpush1.msra.mxu0 0.0
  %1536 = vmatprep.subr.mxu0 0.0
  %1537 = vmatpush1.msra.mxu0 0.0
  %1538 = vmatprep.subr.mxu0 0.0
  %1539 = vmatpush1.msra.mxu0 %v1240
  %1540 = vmatprep.subr.mxu0 0.0
  %1541 = vmatpush2.msra.mxu0 0.0
  %1542 = vmatprep.subr.mxu0 0.0
  %1543 = vmatpush2.msra.mxu0 0.0
  %1544 = vmatprep.subr.mxu0 0.0
  %1545 = vmatpush2.msra.mxu0 0.0
  %1546 = vmatprep.subr.mxu0 0.0
  %1547 = vmatpush2.msra.mxu0 0.0
  %1548 = vmatprep.subr.mxu0 0.0
  %1549 = vmatpush2.msra.mxu0 0.0
  %1550 = vmatprep.subr.mxu0 0.0
  %1551 = vmatpush2.msra.mxu0 0.0
  %1552 = vmatprep.subr.mxu0 0.0
  %1553 = vmatpush2.msra.mxu0 0.0
  %1554 = vmatprep.subr.mxu0 0.0
  %1555 = vmatpush2.msra.mxu0 0.0
  %1556 = vmatprep.subr.mxu0 0.0
  %1557 = vmatpush2.msra.mxu0 0.0
  %1558 = vmatprep.subr.mxu0 0.0
  %1559 = vmatpush2.msra.mxu0 0.0
  %1560 = vmatprep.subr.mxu0 0.0
  %1561 = vmatpush2.msra.mxu0 0.0
  %1562 = vmatprep.subr.mxu0 0.0
  %1563 = vmatpush2.msra.mxu0 0.0
  %1564 = vmatprep.subr.mxu0 0.0
  %1565 = vmatpush2.msra.mxu0 0.0
  %1566 = vmatprep.subr.mxu0 0.0
  %1567 = vmatpush2.msra.mxu0 0.0
  %1568 = vmatprep.subr.mxu0 0.0
  %1569 = vmatpush2.msra.mxu0 0.0
  %1570 = vmatprep.subr.mxu0 0.0
  %1571 = vmatpush2.msra.mxu0 0.0
  %1572 = vmatprep.mubr.f32.mxu0 0.0
  %1573 = vmatmul.mubr.f32.gmra.mxu0 %v1435
  %v1574 = vpop.f32.mrf.mxu0
  %v1575 = vadd.f32 0.0, %v1574
  %v1576 = vpop.f32.mrf.mxu0
  %1577 = vdwg.mxu0
  %v1578 = vlaneseq
  %v1579 = vshrl.u32 %v1578, 7
  %v1580 = vsub.s32 0, %v1579
  %v1581 = vrot.slane %v1504, %v1580
  %v1582 = vlaneseq
  %v1583 = vshrl.u32 %v1582, 7
  %v1584 = vsub.s32 0, %v1583
  %v1585 = vrot.slane %v1506, %v1584
  %v1586 = vlaneseq
  %v1587 = vshrl.u32 %v1586, 7
  %v1588 = vsub.s32 0, %v1587
  %v1589 = vrot.slane %v1575, %v1588
  %v1590 = vsub.f32 %v754, %v1581
  %v1591 = vsub.f32 %v755, %v1585
  %v1592 = vsub.f32 %v756, %v1589
  %v1593 = vmul.f32 %v1590, %v1590
  %v1594 = vmul.f32 %v1591, %v1591
  %v1595 = vmul.f32 %v1592, %v1592
  %v1596 = vsel %vm1241, %v1593, 0.0
  %v1597 = vrot.slane %v1596, 4
  %v1598 = vadd.f32 %v1596, %v1597
  %v1599 = vrot.slane %v1598, 2
  %v1600 = vadd.f32 %v1598, %v1599
  %v1601 = vrot.slane %v1600, 1
  %v1602 = vadd.f32 %v1600, %v1601
  %v1603 = vsel %vm1241, %v1594, 0.0
  %v1604 = vrot.slane %v1603, 4
  %v1605 = vadd.f32 %v1603, %v1604
  %v1606 = vrot.slane %v1605, 2
  %v1607 = vadd.f32 %v1605, %v1606
  %v1608 = vrot.slane %v1607, 1
  %v1609 = vadd.f32 %v1607, %v1608
  %v1610 = vsel %vm1256, %v1595, 0.0
  %v1611 = vrot.slane %v1610, 4
  %v1612 = vadd.f32 %v1610, %v1611
  %v1613 = vrot.slane %v1612, 2
  %v1614 = vadd.f32 %v1612, %v1613
  %v1615 = vrot.slane %v1614, 1
  %v1616 = vadd.f32 %v1614, %v1615
  %v1617 = vadd.f32 %v1602, 0.0
  %v1618 = vadd.f32 %v1609, 0.0
  %v1619 = vadd.f32 %v1616, 0.0
  %v1620 = vsub.f32 %v1199, %v1581
  %v1621 = vsub.f32 %v1200, %v1585
  %v1622 = vsub.f32 %v1201, %v1589
  %v1623 = vmul.f32 %v1620, %v1620
  %v1624 = vmul.f32 %v1621, %v1621
  %v1625 = vmul.f32 %v1622, %v1622
  %v1626 = vsel %vm1241, %v1623, 0.0
  %v1627 = vrot.slane %v1626, 4
  %v1628 = vadd.f32 %v1626, %v1627
  %v1629 = vrot.slane %v1628, 2
  %v1630 = vadd.f32 %v1628, %v1629
  %v1631 = vrot.slane %v1630, 1
  %v1632 = vadd.f32 %v1630, %v1631
  %v1633 = vsel %vm1241, %v1624, 0.0
  %v1634 = vrot.slane %v1633, 4
  %v1635 = vadd.f32 %v1633, %v1634
  %v1636 = vrot.slane %v1635, 2
  %v1637 = vadd.f32 %v1635, %v1636
  %v1638 = vrot.slane %v1637, 1
  %v1639 = vadd.f32 %v1637, %v1638
  %v1640 = vsel %vm1256, %v1625, 0.0
  %v1641 = vrot.slane %v1640, 4
  %v1642 = vadd.f32 %v1640, %v1641
  %v1643 = vrot.slane %v1642, 2
  %v1644 = vadd.f32 %v1642, %v1643
  %v1645 = vrot.slane %v1644, 1
  %v1646 = vadd.f32 %v1644, %v1645
  %v1647 = vadd.f32 %v1617, %v1632
  %v1648 = vadd.f32 %v1618, %v1639
  %v1649 = vadd.f32 %v1619, %v1646
  %v1651 = vsel %vm1288, %v1649, 0
  %1653 = vmatprep.subr.mxu0 0.0
  %1654 = vmatpush1.msra.mxu0 %v1217
  %1655 = vmatprep.subr.mxu0 0.0
  %1656 = vmatpush1.msra.mxu0 %v1216
  %1657 = vmatprep.subr.mxu0 0.0
  %1658 = vmatpush1.msra.mxu0 %v1215
  %1659 = vmatprep.subr.mxu0 0.0
  %1660 = vmatpush1.msra.mxu0 %v1214
  %1661 = vmatprep.subr.mxu0 0.0
  %1662 = vmatpush1.msra.mxu0 %v1213
  %1663 = vmatprep.subr.mxu0 0.0
  %1664 = vmatpush1.msra.mxu0 %v1212
  %1665 = vmatprep.subr.mxu0 0.0
  %1666 = vmatpush1.msra.mxu0 %v1211
  %1667 = vmatprep.subr.mxu0 0.0
  %1668 = vmatpush1.msra.mxu0 %v1210
  %1669 = vmatprep.subr.mxu0 0.0
  %1670 = vmatpush1.msra.mxu0 %v1209
  %1671 = vmatprep.subr.mxu0 0.0
  %1672 = vmatpush1.msra.mxu0 %v1208
  %1673 = vmatprep.subr.mxu0 0.0
  %1674 = vmatpush1.msra.mxu0 %v1207
  %1675 = vmatprep.subr.mxu0 0.0
  %1676 = vmatpush1.msra.mxu0 %v1206
  %1677 = vmatprep.subr.mxu0 0.0
  %1678 = vmatpush1.msra.mxu0 %v1205
  %1679 = vmatprep.subr.mxu0 0.0
  %1680 = vmatpush1.msra.mxu0 %v1204
  %1681 = vmatprep.subr.mxu0 0.0
  %1682 = vmatpush1.msra.mxu0 %v1203
  %1683 = vmatprep.subr.mxu0 0.0
  %1684 = vmatpush1.msra.mxu0 %v1202
  %1685 = vmatprep.subr.mxu0 0.0
  %1686 = vmatpush2.msra.mxu0 %v1233
  %1687 = vmatprep.subr.mxu0 0.0
  %1688 = vmatpush2.msra.mxu0 %v1232
  %1689 = vmatprep.subr.mxu0 0.0
  %1690 = vmatpush2.msra.mxu0 %v1231
  %1691 = vmatprep.subr.mxu0 0.0
  %1692 = vmatpush2.msra.mxu0 %v1230
  %1693 = vmatprep.subr.mxu0 0.0
  %1694 = vmatpush2.msra.mxu0 %v1229
  %1695 = vmatprep.subr.mxu0 0.0
  %1696 = vmatpush2.msra.mxu0 %v1228
  %1697 = vmatprep.subr.mxu0 0.0
  %1698 = vmatpush2.msra.mxu0 %v1227
  %1699 = vmatprep.subr.mxu0 0.0
  %1700 = vmatpush2.msra.mxu0 %v1226
  %1701 = vmatprep.subr.mxu0 0.0
  %1702 = vmatpush2.msra.mxu0 %v1225
  %1703 = vmatprep.subr.mxu0 0.0
  %1704 = vmatpush2.msra.mxu0 %v1224
  %1705 = vmatprep.subr.mxu0 0.0
  %1706 = vmatpush2.msra.mxu0 %v1223
  %1707 = vmatprep.subr.mxu0 0.0
  %1708 = vmatpush2.msra.mxu0 %v1222
  %1709 = vmatprep.subr.mxu0 0.0
  %1710 = vmatpush2.msra.mxu0 %v1221
  %1711 = vmatprep.subr.mxu0 0.0
  %1712 = vmatpush2.msra.mxu0 %v1220
  %1713 = vmatprep.subr.mxu0 0.0
  %1714 = vmatpush2.msra.mxu0 %v1219
  %1715 = vmatprep.subr.mxu0 0.0
  %1716 = vmatpush2.msra.mxu0 %v1218
  %1717 = vmatprep.mubr.f32.mxu0 %v1648
  %1718 = vmatmul.mubr.f32.gmra.mxu0 %v1647
  %v1719 = vpop.f32.mrf.mxu0
  %v1720 = vadd.f32 0.0, %v1719
  %v1721 = vpop.f32.mrf.mxu0
  %1722 = vdwg.mxu0
  %1723 = vmatprep.subr.mxu0 0.0
  %1724 = vmatpush1.msra.mxu0 0.0
  %1725 = vmatprep.subr.mxu0 0.0
  %1726 = vmatpush1.msra.mxu0 0.0
  %1727 = vmatprep.subr.mxu0 0.0
  %1728 = vmatpush1.msra.mxu0 0.0
  %1729 = vmatprep.subr.mxu0 0.0
  %1730 = vmatpush1.msra.mxu0 0.0
  %1731 = vmatprep.subr.mxu0 0.0
  %1732 = vmatpush1.msra.mxu0 0.0
  %1733 = vmatprep.subr.mxu0 0.0
  %1734 = vmatpush1.msra.mxu0 0.0
  %1735 = vmatprep.subr.mxu0 0.0
  %1736 = vmatpush1.msra.mxu0 0.0
  %1737 = vmatprep.subr.mxu0 0.0
  %1738 = vmatpush1.msra.mxu0 0.0
  %1739 = vmatprep.subr.mxu0 0.0
  %1740 = vmatpush1.msra.mxu0 0.0
  %1741 = vmatprep.subr.mxu0 0.0
  %1742 = vmatpush1.msra.mxu0 0.0
  %1743 = vmatprep.subr.mxu0 0.0
  %1744 = vmatpush1.msra.mxu0 0.0
  %1745 = vmatprep.subr.mxu0 0.0
  %1746 = vmatpush1.msra.mxu0 0.0
  %1747 = vmatprep.subr.mxu0 0.0
  %1748 = vmatpush1.msra.mxu0 %v1237
  %1749 = vmatprep.subr.mxu0 0.0
  %1750 = vmatpush1.msra.mxu0 %v1236
  %1751 = vmatprep.subr.mxu0 0.0
  %1752 = vmatpush1.msra.mxu0 %v1235
  %1753 = vmatprep.subr.mxu0 0.0
  %1754 = vmatpush1.msra.mxu0 %v1234
  %1755 = vmatprep.subr.mxu0 0.0
  %1756 = vmatpush2.msra.mxu0 0.0
  %1757 = vmatprep.subr.mxu0 0.0
  %1758 = vmatpush2.msra.mxu0 0.0
  %1759 = vmatprep.subr.mxu0 0.0
  %1760 = vmatpush2.msra.mxu0 0.0
  %1761 = vmatprep.subr.mxu0 0.0
  %1762 = vmatpush2.msra.mxu0 0.0
  %1763 = vmatprep.subr.mxu0 0.0
  %1764 = vmatpush2.msra.mxu0 0.0
  %1765 = vmatprep.subr.mxu0 0.0
  %1766 = vmatpush2.msra.mxu0 0.0
  %1767 = vmatprep.subr.mxu0 0.0
  %1768 = vmatpush2.msra.mxu0 0.0
  %1769 = vmatprep.subr.mxu0 0.0
  %1770 = vmatpush2.msra.mxu0 0.0
  %1771 = vmatprep.subr.mxu0 0.0
  %1772 = vmatpush2.msra.mxu0 0.0
  %1773 = vmatprep.subr.mxu0 0.0
  %1774 = vmatpush2.msra.mxu0 0.0
  %1775 = vmatprep.subr.mxu0 0.0
  %1776 = vmatpush2.msra.mxu0 0.0
  %1777 = vmatprep.subr.mxu0 0.0
  %1778 = vmatpush2.msra.mxu0 0.0
  %1779 = vmatprep.subr.mxu0 0.0
  %1780 = vmatpush2.msra.mxu0 0.0
  %1781 = vmatprep.subr.mxu0 0.0
  %1782 = vmatpush2.msra.mxu0 0.0
  %1783 = vmatprep.subr.mxu0 0.0
  %1784 = vmatpush2.msra.mxu0 0.0
  %1785 = vmatprep.subr.mxu0 0.0
  %1786 = vmatpush2.msra.mxu0 0.0
  %1787 = vmatprep.mubr.f32.mxu0 0.0
  %1788 = vmatmul.mubr.f32.gmra.mxu0 %v1651
  %v1789 = vpop.f32.mrf.mxu0
  %v1790 = vadd.f32 %v1720, %v1789
  %v1791 = vpop.f32.mrf.mxu0
  %1792 = vdwg.mxu0
  %v1793 = vmul.f32 %v1790, 0.0023148148
  %v1794 = vld [vmem:[%s4] sm:$0x1]
  %v1795 = vadd.f32 %v1793, 1e-05
  %v1796 = vrsqrt.pop %v1795
  %v1797 = vmul.f32 %v1795, %v1796
  %vm1798 = vcmp.eq.f32.partialorder %v1795, inf
  %v1799 = vsel %vm1798, %v1795, %v1797
  %vm1800 = vcmp.eq.f32.partialorder %v1795, 0.0
  %v1801 = vand.u32 %v1795, 2147483648
  %v1802 = vsel %vm1800, %v1801, %v1799
  %v1803 = vrcp.pop %v1802
  %v1804 = vmul.f32 %v1794, %v1803
  %v1805 = vld [vmem:[%s5] sm:$0x1]
  %v1806 = vmul.f32 %v1432, %v1804
  %v1807 = vsub.f32 %v1805, %v1806
  %v1809 = vsel %vm1433, %v1804, 0
  %1811 = vmatprep.subr.mxu0 0.0
  %1812 = vmatpush1.msra.mxu0 0.0
  %1813 = vmatprep.subr.mxu0 0.0
  %1814 = vmatpush1.msra.mxu0 0.0
  %1815 = vmatprep.subr.mxu0 0.0
  %1816 = vmatpush1.msra.mxu0 0.0
  %1817 = vmatprep.subr.mxu0 0.0
  %1818 = vmatpush1.msra.mxu0 0.0
  %1819 = vmatprep.subr.mxu0 0.0
  %1820 = vmatpush1.msra.mxu0 0.0
  %1821 = vmatprep.subr.mxu0 0.0
  %1822 = vmatpush1.msra.mxu0 0.0
  %1823 = vmatprep.subr.mxu0 0.0
  %1824 = vmatpush1.msra.mxu0 0.0
  %1825 = vmatprep.subr.mxu0 0.0
  %1826 = vmatpush1.msra.mxu0 0.0
  %1827 = vmatprep.subr.mxu0 0.0
  %1828 = vmatpush1.msra.mxu0 0.0
  %1829 = vmatprep.subr.mxu0 0.0
  %1830 = vmatpush1.msra.mxu0 0.0
  %1831 = vmatprep.subr.mxu0 0.0
  %1832 = vmatpush1.msra.mxu0 0.0
  %1833 = vmatprep.subr.mxu0 0.0
  %1834 = vmatpush1.msra.mxu0 0.0
  %1835 = vmatprep.subr.mxu0 0.0
  %1836 = vmatpush1.msra.mxu0 0.0
  %1837 = vmatprep.subr.mxu0 0.0
  %1838 = vmatpush1.msra.mxu0 0.0
  %1839 = vmatprep.subr.mxu0 0.0
  %1840 = vmatpush1.msra.mxu0 0.0
  %1841 = vmatprep.subr.mxu0 %v1239
  %1842 = vmatpush1.msra.mxu0 %v1238
  %1843 = vmatprep.subr.mxu0 0.0
  %1844 = vmatpush2.msra.mxu0 0.0
  %1845 = vmatprep.subr.mxu0 0.0
  %1846 = vmatpush2.msra.mxu0 0.0
  %1847 = vmatprep.subr.mxu0 0.0
  %1848 = vmatpush2.msra.mxu0 0.0
  %1849 = vmatprep.subr.mxu0 0.0
  %1850 = vmatpush2.msra.mxu0 0.0
  %1851 = vmatprep.subr.mxu0 0.0
  %1852 = vmatpush2.msra.mxu0 0.0
  %1853 = vmatprep.subr.mxu0 0.0
  %1854 = vmatpush2.msra.mxu0 0.0
  %1855 = vmatprep.subr.mxu0 0.0
  %1856 = vmatpush2.msra.mxu0 0.0
  %1857 = vmatprep.subr.mxu0 0.0
  %1858 = vmatpush2.msra.mxu0 0.0
  %1859 = vmatprep.subr.mxu0 0.0
  %1860 = vmatpush2.msra.mxu0 0.0
  %1861 = vmatprep.subr.mxu0 0.0
  %1862 = vmatpush2.msra.mxu0 0.0
  %1863 = vmatprep.subr.mxu0 0.0
  %1864 = vmatpush2.msra.mxu0 0.0
  %1865 = vmatprep.subr.mxu0 0.0
  %1866 = vmatpush2.msra.mxu0 0.0
  %1867 = vmatprep.subr.mxu0 0.0
  %1868 = vmatpush2.msra.mxu0 0.0
  %1869 = vmatprep.subr.mxu0 0.0
  %1870 = vmatpush2.msra.mxu0 0.0
  %1871 = vmatprep.subr.mxu0 0.0
  %1872 = vmatpush2.msra.mxu0 0.0
  %1873 = vmatprep.subr.mxu0 0.0
  %1874 = vmatpush2.msra.mxu0 0.0
  %1875 = vmatprep.mubr.f32.mxu0 0.0
  %1876 = vmatmul.mubr.f32.gmra.mxu0 %v1809
  %v1877 = vpop.f32.mrf.mxu0
  %v1878 = vadd.f32 0.0, %v1877
  %v1879 = vpop.f32.mrf.mxu0
  %v1880 = vadd.f32 0.0, %v1879
  %1881 = vdwg.mxu0
  %1882 = vmatprep.subr.mxu0 0.0
  %1883 = vmatpush1.msra.mxu0 0.0
  %1884 = vmatprep.subr.mxu0 0.0
  %1885 = vmatpush1.msra.mxu0 0.0
  %1886 = vmatprep.subr.mxu0 0.0
  %1887 = vmatpush1.msra.mxu0 0.0
  %1888 = vmatprep.subr.mxu0 0.0
  %1889 = vmatpush1.msra.mxu0 0.0
  %1890 = vmatprep.subr.mxu0 0.0
  %1891 = vmatpush1.msra.mxu0 0.0
  %1892 = vmatprep.subr.mxu0 0.0
  %1893 = vmatpush1.msra.mxu0 0.0
  %1894 = vmatprep.subr.mxu0 0.0
  %1895 = vmatpush1.msra.mxu0 0.0
  %1896 = vmatprep.subr.mxu0 0.0
  %1897 = vmatpush1.msra.mxu0 0.0
  %1898 = vmatprep.subr.mxu0 0.0
  %1899 = vmatpush1.msra.mxu0 0.0
  %1900 = vmatprep.subr.mxu0 0.0
  %1901 = vmatpush1.msra.mxu0 0.0
  %1902 = vmatprep.subr.mxu0 0.0
  %1903 = vmatpush1.msra.mxu0 0.0
  %1904 = vmatprep.subr.mxu0 0.0
  %1905 = vmatpush1.msra.mxu0 0.0
  %1906 = vmatprep.subr.mxu0 0.0
  %1907 = vmatpush1.msra.mxu0 0.0
  %1908 = vmatprep.subr.mxu0 0.0
  %1909 = vmatpush1.msra.mxu0 0.0
  %1910 = vmatprep.subr.mxu0 0.0
  %1911 = vmatpush1.msra.mxu0 0.0
  %1912 = vmatprep.subr.mxu0 0.0
  %1913 = vmatpush1.msra.mxu0 %v1240
  %1914 = vmatprep.subr.mxu0 0.0
  %1915 = vmatpush2.msra.mxu0 0.0
  %1916 = vmatprep.subr.mxu0 0.0
  %1917 = vmatpush2.msra.mxu0 0.0
  %1918 = vmatprep.subr.mxu0 0.0
  %1919 = vmatpush2.msra.mxu0 0.0
  %1920 = vmatprep.subr.mxu0 0.0
  %1921 = vmatpush2.msra.mxu0 0.0
  %1922 = vmatprep.subr.mxu0 0.0
  %1923 = vmatpush2.msra.mxu0 0.0
  %1924 = vmatprep.subr.mxu0 0.0
  %1925 = vmatpush2.msra.mxu0 0.0
  %1926 = vmatprep.subr.mxu0 0.0
  %1927 = vmatpush2.msra.mxu0 0.0
  %1928 = vmatprep.subr.mxu0 0.0
  %1929 = vmatpush2.msra.mxu0 0.0
  %1930 = vmatprep.subr.mxu0 0.0
  %1931 = vmatpush2.msra.mxu0 0.0
  %1932 = vmatprep.subr.mxu0 0.0
  %1933 = vmatpush2.msra.mxu0 0.0
  %1934 = vmatprep.subr.mxu0 0.0
  %1935 = vmatpush2.msra.mxu0 0.0
  %1936 = vmatprep.subr.mxu0 0.0
  %1937 = vmatpush2.msra.mxu0 0.0
  %1938 = vmatprep.subr.mxu0 0.0
  %1939 = vmatpush2.msra.mxu0 0.0
  %1940 = vmatprep.subr.mxu0 0.0
  %1941 = vmatpush2.msra.mxu0 0.0
  %1942 = vmatprep.subr.mxu0 0.0
  %1943 = vmatpush2.msra.mxu0 0.0
  %1944 = vmatprep.subr.mxu0 0.0
  %1945 = vmatpush2.msra.mxu0 0.0
  %1946 = vmatprep.mubr.f32.mxu0 0.0
  %1947 = vmatmul.mubr.f32.gmra.mxu0 %v1809
  %v1948 = vpop.f32.mrf.mxu0
  %v1949 = vadd.f32 0.0, %v1948
  %v1950 = vpop.f32.mrf.mxu0
  %1951 = vdwg.mxu0
  %v1953 = vsel %vm1433, %v1807, 0
  %1955 = vmatprep.subr.mxu0 0.0
  %1956 = vmatpush1.msra.mxu0 0.0
  %1957 = vmatprep.subr.mxu0 0.0
  %1958 = vmatpush1.msra.mxu0 0.0
  %1959 = vmatprep.subr.mxu0 0.0
  %1960 = vmatpush1.msra.mxu0 0.0
  %1961 = vmatprep.subr.mxu0 0.0
  %1962 = vmatpush1.msra.mxu0 0.0
  %1963 = vmatprep.subr.mxu0 0.0
  %1964 = vmatpush1.msra.mxu0 0.0
  %1965 = vmatprep.subr.mxu0 0.0
  %1966 = vmatpush1.msra.mxu0 0.0
  %1967 = vmatprep.subr.mxu0 0.0
  %1968 = vmatpush1.msra.mxu0 0.0
  %1969 = vmatprep.subr.mxu0 0.0
  %1970 = vmatpush1.msra.mxu0 0.0
  %1971 = vmatprep.subr.mxu0 0.0
  %1972 = vmatpush1.msra.mxu0 0.0
  %1973 = vmatprep.subr.mxu0 0.0
  %1974 = vmatpush1.msra.mxu0 0.0
  %1975 = vmatprep.subr.mxu0 0.0
  %1976 = vmatpush1.msra.mxu0 0.0
  %1977 = vmatprep.subr.mxu0 0.0
  %1978 = vmatpush1.msra.mxu0 0.0
  %1979 = vmatprep.subr.mxu0 0.0
  %1980 = vmatpush1.msra.mxu0 0.0
  %1981 = vmatprep.subr.mxu0 0.0
  %1982 = vmatpush1.msra.mxu0 0.0
  %1983 = vmatprep.subr.mxu0 0.0
  %1984 = vmatpush1.msra.mxu0 0.0
  %1985 = vmatprep.subr.mxu0 %v1239
  %1986 = vmatpush1.msra.mxu0 %v1238
  %1987 = vmatprep.subr.mxu0 0.0
  %1988 = vmatpush2.msra.mxu0 0.0
  %1989 = vmatprep.subr.mxu0 0.0
  %1990 = vmatpush2.msra.mxu0 0.0
  %1991 = vmatprep.subr.mxu0 0.0
  %1992 = vmatpush2.msra.mxu0 0.0
  %1993 = vmatprep.subr.mxu0 0.0
  %1994 = vmatpush2.msra.mxu0 0.0
  %1995 = vmatprep.subr.mxu0 0.0
  %1996 = vmatpush2.msra.mxu0 0.0
  %1997 = vmatprep.subr.mxu0 0.0
  %1998 = vmatpush2.msra.mxu0 0.0
  %1999 = vmatprep.subr.mxu0 0.0
  %2000 = vmatpush2.msra.mxu0 0.0
  %2001 = vmatprep.subr.mxu0 0.0
  %2002 = vmatpush2.msra.mxu0 0.0
  %2003 = vmatprep.subr.mxu0 0.0
  %2004 = vmatpush2.msra.mxu0 0.0
  %2005 = vmatprep.subr.mxu0 0.0
  %2006 = vmatpush2.msra.mxu0 0.0
  %2007 = vmatprep.subr.mxu0 0.0
  %2008 = vmatpush2.msra.mxu0 0.0
  %2009 = vmatprep.subr.mxu0 0.0
  %2010 = vmatpush2.msra.mxu0 0.0
  %2011 = vmatprep.subr.mxu0 0.0
  %2012 = vmatpush2.msra.mxu0 0.0
  %2013 = vmatprep.subr.mxu0 0.0
  %2014 = vmatpush2.msra.mxu0 0.0
  %2015 = vmatprep.subr.mxu0 0.0
  %2016 = vmatpush2.msra.mxu0 0.0
  %2017 = vmatprep.subr.mxu0 0.0
  %2018 = vmatpush2.msra.mxu0 0.0
  %2019 = vmatprep.mubr.f32.mxu0 0.0
  %2020 = vmatmul.mubr.f32.gmra.mxu0 %v1953
  %v2021 = vpop.f32.mrf.mxu0
  %v2022 = vadd.f32 0.0, %v2021
  %v2023 = vpop.f32.mrf.mxu0
  %v2024 = vadd.f32 0.0, %v2023
  %2025 = vdwg.mxu0
  %2026 = vmatprep.subr.mxu0 0.0
  %2027 = vmatpush1.msra.mxu0 0.0
  %2028 = vmatprep.subr.mxu0 0.0
  %2029 = vmatpush1.msra.mxu0 0.0
  %2030 = vmatprep.subr.mxu0 0.0
  %2031 = vmatpush1.msra.mxu0 0.0
  %2032 = vmatprep.subr.mxu0 0.0
  %2033 = vmatpush1.msra.mxu0 0.0
  %2034 = vmatprep.subr.mxu0 0.0
  %2035 = vmatpush1.msra.mxu0 0.0
  %2036 = vmatprep.subr.mxu0 0.0
  %2037 = vmatpush1.msra.mxu0 0.0
  %2038 = vmatprep.subr.mxu0 0.0
  %2039 = vmatpush1.msra.mxu0 0.0
  %2040 = vmatprep.subr.mxu0 0.0
  %2041 = vmatpush1.msra.mxu0 0.0
  %2042 = vmatprep.subr.mxu0 0.0
  %2043 = vmatpush1.msra.mxu0 0.0
  %2044 = vmatprep.subr.mxu0 0.0
  %2045 = vmatpush1.msra.mxu0 0.0
  %2046 = vmatprep.subr.mxu0 0.0
  %2047 = vmatpush1.msra.mxu0 0.0
  %2048 = vmatprep.subr.mxu0 0.0
  %2049 = vmatpush1.msra.mxu0 0.0
  %2050 = vmatprep.subr.mxu0 0.0
  %2051 = vmatpush1.msra.mxu0 0.0
  %2052 = vmatprep.subr.mxu0 0.0
  %2053 = vmatpush1.msra.mxu0 0.0
  %2054 = vmatprep.subr.mxu0 0.0
  %2055 = vmatpush1.msra.mxu0 0.0
  %2056 = vmatprep.subr.mxu0 0.0
  %2057 = vmatpush1.msra.mxu0 %v1240
  %2058 = vmatprep.subr.mxu0 0.0
  %2059 = vmatpush2.msra.mxu0 0.0
  %2060 = vmatprep.subr.mxu0 0.0
  %2061 = vmatpush2.msra.mxu0 0.0
  %2062 = vmatprep.subr.mxu0 0.0
  %2063 = vmatpush2.msra.mxu0 0.0
  %2064 = vmatprep.subr.mxu0 0.0
  %2065 = vmatpush2.msra.mxu0 0.0
  %2066 = vmatprep.subr.mxu0 0.0
  %2067 = vmatpush2.msra.mxu0 0.0
  %2068 = vmatprep.subr.mxu0 0.0
  %2069 = vmatpush2.msra.mxu0 0.0
  %2070 = vmatprep.subr.mxu0 0.0
  %2071 = vmatpush2.msra.mxu0 0.0
  %2072 = vmatprep.subr.mxu0 0.0
  %2073 = vmatpush2.msra.mxu0 0.0
  %2074 = vmatprep.subr.mxu0 0.0
  %2075 = vmatpush2.msra.mxu0 0.0
  %2076 = vmatprep.subr.mxu0 0.0
  %2077 = vmatpush2.msra.mxu0 0.0
  %2078 = vmatprep.subr.mxu0 0.0
  %2079 = vmatpush2.msra.mxu0 0.0
  %2080 = vmatprep.subr.mxu0 0.0
  %2081 = vmatpush2.msra.mxu0 0.0
  %2082 = vmatprep.subr.mxu0 0.0
  %2083 = vmatpush2.msra.mxu0 0.0
  %2084 = vmatprep.subr.mxu0 0.0
  %2085 = vmatpush2.msra.mxu0 0.0
  %2086 = vmatprep.subr.mxu0 0.0
  %2087 = vmatpush2.msra.mxu0 0.0
  %2088 = vmatprep.subr.mxu0 0.0
  %2089 = vmatpush2.msra.mxu0 0.0
  %2090 = vmatprep.mubr.f32.mxu0 0.0
  %2091 = vmatmul.mubr.f32.gmra.mxu0 %v1953
  %v2092 = vpop.f32.mrf.mxu0
  %v2093 = vadd.f32 0.0, %v2092
  %v2094 = vpop.f32.mrf.mxu0
  %2095 = vdwg.mxu0
  %v2096 = vlaneseq
  %v2097 = vshrl.u32 %v2096, 7
  %v2098 = vsub.s32 0, %v2097
  %v2099 = vrot.slane %v1878, %v2098
  %v2100 = vlaneseq
  %v2101 = vshrl.u32 %v2100, 7
  %v2102 = vsub.s32 0, %v2101
  %v2103 = vrot.slane %v1880, %v2102
  %v2104 = vlaneseq
  %v2105 = vshrl.u32 %v2104, 7
  %v2106 = vsub.s32 0, %v2105
  %v2107 = vrot.slane %v1949, %v2106
  %v2108 = vmul.f32 %v754, %v2099
  %v2109 = vmul.f32 %v755, %v2103
  %v2110 = vmul.f32 %v756, %v2107
  %v2111 = vlaneseq
  %v2112 = vshrl.u32 %v2111, 7
  %v2113 = vsub.s32 0, %v2112
  %v2114 = vrot.slane %v2022, %v2113
  %v2115 = vlaneseq
  %v2116 = vshrl.u32 %v2115, 7
  %v2117 = vsub.s32 0, %v2116
  %v2118 = vrot.slane %v2024, %v2117
  %v2119 = vlaneseq
  %v2120 = vshrl.u32 %v2119, 7
  %v2121 = vsub.s32 0, %v2120
  %v2122 = vrot.slane %v2093, %v2121
  %v2123 = vadd.f32 %v2108, %v2114
  %v2124 = vadd.f32 %v2109, %v2118
  %v2125 = vadd.f32 %v2110, %v2122
  %v2126 = vmax.f32 %v2123, 0.0
  %v2127 = vmax.f32 %v2124, 0.0
  %v2128 = vmax.f32 %v2125, 0.0
  %2129 = vst [vmem:[%s6] sm:$0x3f] %v2126
  %2130 = vst [vmem:[%s6 + $0x8] sm:$0x3f] %v2127
  %2131 = vst.msk [vmem:[%s6 + $0x10] sm:$0x3f] %vm1256, %v2128
  %v2132 = vmul.f32 %v1199, %v2099
  %v2133 = vmul.f32 %v1200, %v2103
  %v2134 = vmul.f32 %v1201, %v2107
  %v2135 = vadd.f32 %v2132, %v2114
  %v2136 = vadd.f32 %v2133, %v2118
  %v2137 = vadd.f32 %v2134, %v2122
  %v2138 = vmax.f32 %v2135, 0.0
  %v2139 = vmax.f32 %v2136, 0.0
  %v2140 = vmax.f32 %v2137, 0.0
  %v2144 = vrot.slane %v2138, 2
  %v2145 = vrot.slane %v2139, 2
  %v2146 = vrot.slane %v2140, 2
  %2150 = vst [vmem:[%s6] sm:$0xc0] %v2144
  %2151 = vst [vmem:[%s6 + $0x8] sm:$0xc0] %v2145
  %vm2152 = vcmask 261126
  %2153 = vst.msk [vmem:[%s6 + $0x10] sm:$0xc0] %vm2152, %v2146
  %2154 = vst [vmem:[%s6 + $0x18] sm:$0xf] %v2144
  %2155 = vst [vmem:[%s6 + $0x20] sm:$0xf] %v2145
  %vm2156 = vcmask 257024
  %2157 = vst.msk [vmem:[%s6 + $0x28] sm:$0xf] %vm2156, %v2146
  // Predicated region
  $region26: #{conv3d_block_forward.1} parent=0 // pred_check
    _
  $region27: #{conv3d_block_forward.1} parent=0 // pred_check_branch
    %2159 = sbr.rel (0) target = $region29
  $region28: #{conv3d_block_forward.1} parent=0 // pred_region
    _
  $region29: #{conv3d_block_forward.1} parent=0 // pred_fallthru
    _
  // Predicated region
  $region30: #{conv3d_block_forward.1} parent=0 // pred_check
    _
  $region31: #{conv3d_block_forward.1} parent=0 // pred_check_branch
    %2161 = sbr.rel (0) target = $region33
  $region32: #{conv3d_block_forward.1} parent=0 // pred_region
    _
  $region33: #{conv3d_block_forward.1} parent=0 // pred_fallthru
    _

</llo_original>
